<compile_context>
chip_gen: v7x
topology: tpu7x:2x2x1
jax: 0.10.0
libtpu: 0.0.40
codegen_flags: <defaults>
</compile_context>

<pallas_src>
import math

import jax
import jax.numpy as jnp
import numpy as np
from jax.experimental import pallas as pl
from jax.experimental.pallas import tpu as pltpu


def _make_kernel(num_heads, head_dim, hidden):
    """Per-batch-element kernel: qkvv projection + EF projection + spatial attention."""
    C = hidden
    d = head_dim

    def kernel(x_ref, w_ref, ef_ref, t2_ref, o_ref):
        x = x_ref[0]          # (N, C)   bf16
        w = w_ref[...]        # (C, 3C)  bf16  (q | k | v_SA columns; v_CA dropped)
        ef = ef_ref[...]      # (N, K)   bf16

        # qkv projection for all heads at once (bf16 MXU, f32 accumulation).
        qkv = jnp.dot(x, w, preferred_element_type=jnp.float32)       # (N, 3C)
        q_all = qkv[:, 0:C]                                           # (N, C)
        k_all = qkv[:, C:2 * C]                                       # (N, C)
        v_all = qkv[:, 2 * C:3 * C]                                   # (N, C)

        # F.normalize(q_shared, dim=-1): q_shared is (d, N) per head, so each
        # channel column of q_all is normalized over the N tokens.  One
        # cross-sublane reduce + EUP rsqrt for all heads (f32).
        col_sq = jnp.sum(q_all * q_all, axis=0, keepdims=True)        # (1, C)
        qn_all = q_all * jax.lax.rsqrt(jnp.maximum(col_sq, 1e-24))    # (N, C)
        qn_bf = qn_all.astype(jnp.bfloat16)

        # EF projections for all heads in two full-C matmuls:
        #   kp_all[c, k] = sum_n k_all[n, c] * ef[n, k]   (== k_shared^T @ EF)
        kp_all = jax.lax.dot_general(
            k_all.astype(jnp.bfloat16), ef, (((0,), (0,)), ((), ())),
            preferred_element_type=jnp.float32)                       # (C, K)
        vp_all = jax.lax.dot_general(
            v_all.astype(jnp.bfloat16), ef, (((0,), (0,)), ((), ())),
            preferred_element_type=jnp.float32)                       # (C, K)

        heads = []
        for h in range(num_heads):              # static unroll, num_heads is small
            lo = h * d
            qn_h = qn_bf[:, lo:lo + d]                                # (N, d)
            # Fold temperature2[h] into the (d, K) kp slice instead of scaling
            # the (N, K) attention tile (scalar read from SMEM).
            kp_h = (kp_all[lo:lo + d, :] * t2_ref[h]).astype(jnp.bfloat16)   # (d, K)
            vp_h = vp_all[lo:lo + d, :].astype(jnp.bfloat16)                 # (d, K)

            logits = jnp.dot(qn_h, kp_h, preferred_element_type=jnp.float32)  # (N, K)
            # Softmax in f32; divide via the EUP approximate reciprocal.
            m = jnp.max(logits, axis=-1, keepdims=True)
            e = jnp.exp(logits - m)
            s = jnp.sum(e, axis=-1, keepdims=True)
            p = e * pl.reciprocal(s, approx=True)                     # (N, K)
            # TODO(synk): attn_drop_2 (nn.Dropout) is identity at inference; omitted.

            # x_SA head = attn @ v_proj^T  -> (N, d)
            xh = jax.lax.dot_general(
                p.astype(jnp.bfloat16), vp_h, (((1,), (1,)), ((), ())),
                preferred_element_type=jnp.float32)                   # (N, d)
            heads.append(xh)

        # Single lane-dense store of the whole (N, C) slab (heads concatenated
        # head-major along channels); the module's permute happens in the wrapper.
        o_ref[0] = jnp.concatenate(heads, axis=-1).astype(o_ref.dtype)

    return kernel


def spatial_attention_pallas(x, w_qkvv, ef, temperature2, num_heads):
    """x: (B, C, W, H, Z) float32.  Returns (B, C, W, H, Z) float32."""
    B, C, W, H, Z = x.shape
    N = W * H * Z
    d = C // num_heads
    K = ef.shape[1]
    cdt = jnp.bfloat16   # MXU input dtype (accumulation stays f32 inside kernel)

    x_flat = jnp.transpose(x.reshape(B, C, N), (0, 2, 1)).astype(cdt)      # (B, N, C)
    # Drop the never-used v_CA block (rows [2C, 3C) of the Linear weight).
    w_used = jnp.concatenate([w_qkvv[:2 * C], w_qkvv[3 * C:]], axis=0)     # (3C, C)
    w_t = w_used.T.astype(cdt)                                             # (C, 3C)
    ef_c = ef.astype(cdt)                                                  # (N, K)
    t2 = temperature2.reshape(num_heads).astype(jnp.float32)               # (h,) -> SMEM

    # Rough per-step VMEM budget (double-buffered blocks + f32 intermediates),
    # with 2x headroom.  Re-derive / tile N for production sizes (esp. v7x 64 MiB).
    per_step = (2 * N * C * 2            # x block (bf16), double-buffered
                + 2 * N * C * 4          # out block (f32), double-buffered
                + 2 * C * 3 * C * 2      # weight (bf16)
                + 2 * N * K * 2          # EF (bf16)
                + N * 3 * C * 4          # qkv intermediate (f32)
                + 2 * N * C * 4          # qn + concatenated output slabs (f32)
                + 3 * N * K * 4          # per-head softmax temporaries (f32)
                + 2 * C * K * 4)         # kp / vp (f32)
    vmem_limit = int(max(32 * 1024 * 1024, 2 * per_step))

    kernel = _make_kernel(num_heads, d, C)
    out = pl.pallas_call(
        kernel,
        out_shape=jax.ShapeDtypeStruct((B, N, C), jnp.float32),
        grid_spec=pltpu.PrefetchScalarGridSpec(
            num_scalar_prefetch=0,
            grid=(B,),
            in_specs=[
                pl.BlockSpec((1, N, C), lambda b: (b, 0, 0)),
                pl.BlockSpec((C, 3 * C), lambda b: (0, 0)),
                pl.BlockSpec((N, K), lambda b: (0, 0)),
                pl.BlockSpec(memory_space=pltpu.MemorySpace.SMEM),
            ],
            out_specs=pl.BlockSpec((1, N, C), lambda b: (b, 0, 0)),
        ),
        compiler_params=pltpu.CompilerParams(
            dimension_semantics=("parallel",),   # batch steps shard across TCs on v7x
            vmem_limit_bytes=vmem_limit,
        ),
    )(x_flat, w_t, ef_c, t2)

    # Reproduce the PyTorch epilogue exactly:
    #   x_SA(B,h,N,d).permute(0,3,1,2).reshape(B,N,C).reshape(B,W,H,Z,C).permute(0,4,1,2,3)
    # The kernel emitted head-major channels: out[b, n, h*d + dd] = x_SA[b, h, n, dd].
    x_sa = out.reshape(B, N, num_heads, d).transpose(0, 3, 2, 1).reshape(B, N, C)
    x_sa = x_sa.reshape(B, W, H, Z, C).transpose(0, 4, 1, 2, 3)
    return x_sa


def spatial_attention_reference(x, w_qkvv, ef, temperature2, num_heads):
    """Pure-JAX (f32) transcription of the PyTorch forward, for verification."""
    B, C, W, H, Z = x.shape
    N = W * H * Z
    d = C // num_heads
    xf = jnp.transpose(x.reshape(B, C, N), (0, 2, 1))                  # (B, N, C)
    qkvv = xf @ w_qkvv.T                                               # (B, N, 4C)
    qkvv = qkvv.reshape(B, N, 4, num_heads, d).transpose(2, 0, 3, 1, 4)
    q, k, _v_ca, v_sa = qkvv[0], qkvv[1], qkvv[2], qkvv[3]             # (B, h, N, d)
    q = jnp.swapaxes(q, -2, -1)                                        # (B, h, d, N)
    k = jnp.swapaxes(k, -2, -1)
    v_sa = jnp.swapaxes(v_sa, -2, -1)
    kp = jnp.einsum('bhdn,nk->bhdk', k, ef)
    vp = jnp.einsum('bhdn,nk->bhdk', v_sa, ef)
    qn = q / jnp.maximum(jnp.linalg.norm(q, axis=-1, keepdims=True), 1e-12)
    attn = jnp.einsum('bhdn,bhdk->bhnk', qn, kp) * temperature2[None]
    attn = jax.nn.softmax(attn, axis=-1)
    xsa = jnp.einsum('bhnk,bhdk->bhnd', attn, vp)                      # (B, h, N, d)
    xsa = jnp.transpose(xsa, (0, 3, 1, 2)).reshape(B, N, C)
    xsa = xsa.reshape(B, W, H, Z, C).transpose(0, 4, 1, 2, 3)
    return xsa


if __name__ == "__main__":
    # Small shapes consistent with the module:
    #   hidden_size = C = 32, num_heads = 4 (head_dim 8),
    #   spatial 4x4x4 -> N = input_size = 64, proj_size = 16.
    B, C, W, H, Z = 2, 32, 4, 4, 4
    num_heads = 4
    N = W * H * Z
    proj_size = 16

    key = jax.random.PRNGKey(0)
    kx, kw, kef = jax.random.split(key, 3)

    x = jax.random.normal(kx, (B, C, W, H, Z), dtype=jnp.float32)

    # Deterministic parameter init mirroring the module's __init__ shapes.
    lin_std = 1.0 / math.sqrt(C)
    w_qkvv = jax.random.uniform(kw, (4 * C, C), jnp.float32, -lin_std, lin_std)   # Linear weight (out, in)
    ef_std = 1.0 / math.sqrt(proj_size)
    ef = jax.random.uniform(kef, (N, proj_size), jnp.float32, -ef_std, ef_std)    # EF (input_size, proj_size)
    temperature2 = jnp.ones((num_heads, 1, 1), jnp.float32)

    out = spatial_attention_pallas(x, w_qkvv, ef, temperature2, num_heads)
    out = jax.block_until_ready(out)

    ref = spatial_attention_reference(x, w_qkvv, ef, temperature2, num_heads)
    # bf16 MXU inputs (f32 accumulation) => modestly relaxed tolerance vs the
    # pure-f32 reference, as anticipated in the performance review.
    np.testing.assert_allclose(np.asarray(out), np.asarray(ref), rtol=3e-2, atol=3e-2)

    print("KERNEL_OK")
</pallas_src>

<mosaic_0001>
module attributes {stable_mosaic.version = 11 : i64} {
  func.func @kernel(%arg0: i32, %arg1: memref<1x64x32xbf16, #tpu.memory_space<vmem>>, %arg2: memref<32x96xbf16, #tpu.memory_space<vmem>>, %arg3: memref<64x16xbf16, #tpu.memory_space<vmem>>, %arg4: memref<4xf32, #tpu.memory_space<smem>>, %arg5: memref<1x64x32xf32, #tpu.memory_space<vmem>>) attributes {dimension_semantics = [#tpu.dimension_semantics<parallel>], iteration_bounds = array<i64: 2>, scalar_prefetch = 0 : i64, scratch_operands = 0 : i64, tpu.core_type = #tpu.core_type<tc>, window_params = [{transform_indices = @transform_0, window_bounds = array<i64: 1, 64, 32>}, {pipeline_mode = #tpu.pipeline_mode<synchronous>, transform_indices = @transform_1, window_bounds = array<i64: 32, 96>}, {pipeline_mode = #tpu.pipeline_mode<synchronous>, transform_indices = @transform_2, window_bounds = array<i64: 64, 16>}, {transform_indices = @transform_3, window_bounds = array<i64: 4>}, {transform_indices = @transform_4, window_bounds = array<i64: 1, 64, 32>}]} {
    %c0 = arith.constant 0 : index
    %c0_0 = arith.constant 0 : index
    %c0_1 = arith.constant 0 : index
    %0 = vector.load %arg1[%c0, %c0_0, %c0_1] : memref<1x64x32xbf16, #tpu.memory_space<vmem>>, vector<1x64x32xbf16>
    %1 = vector.shape_cast %0 : vector<1x64x32xbf16> to vector<64x32xbf16>
    %c0_2 = arith.constant 0 : index
    %c0_3 = arith.constant 0 : index
    %2 = vector.load %arg2[%c0_2, %c0_3] : memref<32x96xbf16, #tpu.memory_space<vmem>>, vector<32x96xbf16>
    %c0_4 = arith.constant 0 : index
    %c0_5 = arith.constant 0 : index
    %3 = vector.load %arg3[%c0_4, %c0_5] : memref<64x16xbf16, #tpu.memory_space<vmem>>, vector<64x16xbf16>
    %cst = arith.constant dense<0.000000e+00> : vector<64x96xf32>
    %4 = tpu.matmul %1, %2, %cst {dimension_numbers = #tpu.dot_dimension_numbers<[1], [0], [0], [1], [0, 0, 1, 1], [], []>} : vector<64x32xbf16>, vector<32x96xbf16>, vector<64x96xf32> -> vector<64x96xf32>
    %5 = vector.extract_strided_slice %4 {offsets = [0, 0], sizes = [64, 32], strides = [1, 1]} : vector<64x96xf32> to vector<64x32xf32>
    %6 = vector.extract_strided_slice %4 {offsets = [0, 32], sizes = [64, 32], strides = [1, 1]} : vector<64x96xf32> to vector<64x32xf32>
    %7 = vector.extract_strided_slice %4 {offsets = [0, 64], sizes = [64, 32], strides = [1, 1]} : vector<64x96xf32> to vector<64x32xf32>
    %8 = arith.mulf %5, %5 : vector<64x32xf32>
    %cst_6 = arith.constant dense<0.000000e+00> : vector<32xf32>
    %9 = vector.multi_reduction <add>, %8, %cst_6 [0] : vector<64x32xf32> to vector<32xf32>
    %10 = vector.shape_cast %9 : vector<32xf32> to vector<1x32xf32>
    %cst_7 = arith.constant 1.000000e-24 : f32
    %11 = vector.broadcast %cst_7 : f32 to vector<1x32xf32>
    %12 = arith.maximumf %10, %11 : vector<1x32xf32>
    %13 = math.rsqrt %12 : vector<1x32xf32>
    %14 = vector.broadcast %13 : vector<1x32xf32> to vector<64x32xf32>
    %15 = arith.mulf %5, %14 : vector<64x32xf32>
    %16 = arith.truncf %15 : vector<64x32xf32> to vector<64x32xbf16>
    %17 = arith.truncf %6 : vector<64x32xf32> to vector<64x32xbf16>
    %cst_8 = arith.constant dense<0.000000e+00> : vector<32x16xf32>
    %18 = tpu.matmul %17, %3, %cst_8 {dimension_numbers = #tpu.dot_dimension_numbers<[0], [0], [1], [1], [0, 1, 1, 1], [], []>} : vector<64x32xbf16>, vector<64x16xbf16>, vector<32x16xf32> -> vector<32x16xf32>
    %19 = arith.truncf %7 : vector<64x32xf32> to vector<64x32xbf16>
    %cst_9 = arith.constant dense<0.000000e+00> : vector<32x16xf32>
    %20 = tpu.matmul %19, %3, %cst_9 {dimension_numbers = #tpu.dot_dimension_numbers<[0], [0], [1], [1], [0, 1, 1, 1], [], []>} : vector<64x32xbf16>, vector<64x16xbf16>, vector<32x16xf32> -> vector<32x16xf32>
    %21 = vector.extract_strided_slice %16 {offsets = [0, 0], sizes = [64, 8], strides = [1, 1]} : vector<64x32xbf16> to vector<64x8xbf16>
    %22 = vector.extract_strided_slice %18 {offsets = [0, 0], sizes = [8, 16], strides = [1, 1]} : vector<32x16xf32> to vector<8x16xf32>
    %c0_10 = arith.constant 0 : index
    %23 = memref.load %arg4[%c0_10] : memref<4xf32, #tpu.memory_space<smem>>
    %24 = vector.broadcast %23 : f32 to vector<8x16xf32>
    %25 = arith.mulf %22, %24 : vector<8x16xf32>
    %26 = arith.truncf %25 : vector<8x16xf32> to vector<8x16xbf16>
    %27 = vector.extract_strided_slice %20 {offsets = [0, 0], sizes = [8, 16], strides = [1, 1]} : vector<32x16xf32> to vector<8x16xf32>
    %28 = arith.truncf %27 : vector<8x16xf32> to vector<8x16xbf16>
    %cst_11 = arith.constant dense<0.000000e+00> : vector<64x16xf32>
    %29 = tpu.matmul %21, %26, %cst_11 {dimension_numbers = #tpu.dot_dimension_numbers<[1], [0], [0], [1], [0, 0, 1, 1], [], []>} : vector<64x8xbf16>, vector<8x16xbf16>, vector<64x16xf32> -> vector<64x16xf32>
    %cst_12 = arith.constant dense<0xFF800000> : vector<64xf32>
    %30 = vector.multi_reduction <maximumf>, %29, %cst_12 [1] : vector<64x16xf32> to vector<64xf32>
    %31 = vector.shape_cast %30 : vector<64xf32> to vector<64x1xf32>
    %32 = vector.broadcast %31 : vector<64x1xf32> to vector<64x16xf32>
    %33 = arith.subf %29, %32 : vector<64x16xf32>
    %34 = math.exp %33 : vector<64x16xf32>
    %cst_13 = arith.constant dense<0.000000e+00> : vector<64xf32>
    %35 = vector.multi_reduction <add>, %34, %cst_13 [1] : vector<64x16xf32> to vector<64xf32>
    %36 = vector.shape_cast %35 : vector<64xf32> to vector<64x1xf32>
    %37 = tpu.reciprocal %36 {approx = true} : vector<64x1xf32> -> vector<64x1xf32>
    %38 = vector.broadcast %37 : vector<64x1xf32> to vector<64x16xf32>
    %39 = arith.mulf %34, %38 : vector<64x16xf32>
    %40 = arith.truncf %39 : vector<64x16xf32> to vector<64x16xbf16>
    %cst_14 = arith.constant dense<0.000000e+00> : vector<64x8xf32>
    %41 = tpu.matmul %40, %28, %cst_14 {dimension_numbers = #tpu.dot_dimension_numbers<[1], [1], [0], [0], [0, 0, 1, 0], [], []>} : vector<64x16xbf16>, vector<8x16xbf16>, vector<64x8xf32> -> vector<64x8xf32>
    %42 = vector.extract_strided_slice %16 {offsets = [0, 8], sizes = [64, 8], strides = [1, 1]} : vector<64x32xbf16> to vector<64x8xbf16>
    %43 = vector.extract_strided_slice %18 {offsets = [8, 0], sizes = [8, 16], strides = [1, 1]} : vector<32x16xf32> to vector<8x16xf32>
    %c1 = arith.constant 1 : index
    %44 = memref.load %arg4[%c1] : memref<4xf32, #tpu.memory_space<smem>>
    %45 = vector.broadcast %44 : f32 to vector<8x16xf32>
    %46 = arith.mulf %43, %45 : vector<8x16xf32>
    %47 = arith.truncf %46 : vector<8x16xf32> to vector<8x16xbf16>
    %48 = vector.extract_strided_slice %20 {offsets = [8, 0], sizes = [8, 16], strides = [1, 1]} : vector<32x16xf32> to vector<8x16xf32>
    %49 = arith.truncf %48 : vector<8x16xf32> to vector<8x16xbf16>
    %cst_15 = arith.constant dense<0.000000e+00> : vector<64x16xf32>
    %50 = tpu.matmul %42, %47, %cst_15 {dimension_numbers = #tpu.dot_dimension_numbers<[1], [0], [0], [1], [0, 0, 1, 1], [], []>} : vector<64x8xbf16>, vector<8x16xbf16>, vector<64x16xf32> -> vector<64x16xf32>
    %cst_16 = arith.constant dense<0xFF800000> : vector<64xf32>
    %51 = vector.multi_reduction <maximumf>, %50, %cst_16 [1] : vector<64x16xf32> to vector<64xf32>
    %52 = vector.shape_cast %51 : vector<64xf32> to vector<64x1xf32>
    %53 = vector.broadcast %52 : vector<64x1xf32> to vector<64x16xf32>
    %54 = arith.subf %50, %53 : vector<64x16xf32>
    %55 = math.exp %54 : vector<64x16xf32>
    %cst_17 = arith.constant dense<0.000000e+00> : vector<64xf32>
    %56 = vector.multi_reduction <add>, %55, %cst_17 [1] : vector<64x16xf32> to vector<64xf32>
    %57 = vector.shape_cast %56 : vector<64xf32> to vector<64x1xf32>
    %58 = tpu.reciprocal %57 {approx = true} : vector<64x1xf32> -> vector<64x1xf32>
    %59 = vector.broadcast %58 : vector<64x1xf32> to vector<64x16xf32>
    %60 = arith.mulf %55, %59 : vector<64x16xf32>
    %61 = arith.truncf %60 : vector<64x16xf32> to vector<64x16xbf16>
    %cst_18 = arith.constant dense<0.000000e+00> : vector<64x8xf32>
    %62 = tpu.matmul %61, %49, %cst_18 {dimension_numbers = #tpu.dot_dimension_numbers<[1], [1], [0], [0], [0, 0, 1, 0], [], []>} : vector<64x16xbf16>, vector<8x16xbf16>, vector<64x8xf32> -> vector<64x8xf32>
    %63 = vector.extract_strided_slice %16 {offsets = [0, 16], sizes = [64, 8], strides = [1, 1]} : vector<64x32xbf16> to vector<64x8xbf16>
    %64 = vector.extract_strided_slice %18 {offsets = [16, 0], sizes = [8, 16], strides = [1, 1]} : vector<32x16xf32> to vector<8x16xf32>
    %c2 = arith.constant 2 : index
    %65 = memref.load %arg4[%c2] : memref<4xf32, #tpu.memory_space<smem>>
    %66 = vector.broadcast %65 : f32 to vector<8x16xf32>
    %67 = arith.mulf %64, %66 : vector<8x16xf32>
    %68 = arith.truncf %67 : vector<8x16xf32> to vector<8x16xbf16>
    %69 = vector.extract_strided_slice %20 {offsets = [16, 0], sizes = [8, 16], strides = [1, 1]} : vector<32x16xf32> to vector<8x16xf32>
    %70 = arith.truncf %69 : vector<8x16xf32> to vector<8x16xbf16>
    %cst_19 = arith.constant dense<0.000000e+00> : vector<64x16xf32>
    %71 = tpu.matmul %63, %68, %cst_19 {dimension_numbers = #tpu.dot_dimension_numbers<[1], [0], [0], [1], [0, 0, 1, 1], [], []>} : vector<64x8xbf16>, vector<8x16xbf16>, vector<64x16xf32> -> vector<64x16xf32>
    %cst_20 = arith.constant dense<0xFF800000> : vector<64xf32>
    %72 = vector.multi_reduction <maximumf>, %71, %cst_20 [1] : vector<64x16xf32> to vector<64xf32>
    %73 = vector.shape_cast %72 : vector<64xf32> to vector<64x1xf32>
    %74 = vector.broadcast %73 : vector<64x1xf32> to vector<64x16xf32>
    %75 = arith.subf %71, %74 : vector<64x16xf32>
    %76 = math.exp %75 : vector<64x16xf32>
    %cst_21 = arith.constant dense<0.000000e+00> : vector<64xf32>
    %77 = vector.multi_reduction <add>, %76, %cst_21 [1] : vector<64x16xf32> to vector<64xf32>
    %78 = vector.shape_cast %77 : vector<64xf32> to vector<64x1xf32>
    %79 = tpu.reciprocal %78 {approx = true} : vector<64x1xf32> -> vector<64x1xf32>
    %80 = vector.broadcast %79 : vector<64x1xf32> to vector<64x16xf32>
    %81 = arith.mulf %76, %80 : vector<64x16xf32>
    %82 = arith.truncf %81 : vector<64x16xf32> to vector<64x16xbf16>
    %cst_22 = arith.constant dense<0.000000e+00> : vector<64x8xf32>
    %83 = tpu.matmul %82, %70, %cst_22 {dimension_numbers = #tpu.dot_dimension_numbers<[1], [1], [0], [0], [0, 0, 1, 0], [], []>} : vector<64x16xbf16>, vector<8x16xbf16>, vector<64x8xf32> -> vector<64x8xf32>
    %84 = vector.extract_strided_slice %16 {offsets = [0, 24], sizes = [64, 8], strides = [1, 1]} : vector<64x32xbf16> to vector<64x8xbf16>
    %85 = vector.extract_strided_slice %18 {offsets = [24, 0], sizes = [8, 16], strides = [1, 1]} : vector<32x16xf32> to vector<8x16xf32>
    %c3 = arith.constant 3 : index
    %86 = memref.load %arg4[%c3] : memref<4xf32, #tpu.memory_space<smem>>
    %87 = vector.broadcast %86 : f32 to vector<8x16xf32>
    %88 = arith.mulf %85, %87 : vector<8x16xf32>
    %89 = arith.truncf %88 : vector<8x16xf32> to vector<8x16xbf16>
    %90 = vector.extract_strided_slice %20 {offsets = [24, 0], sizes = [8, 16], strides = [1, 1]} : vector<32x16xf32> to vector<8x16xf32>
    %91 = arith.truncf %90 : vector<8x16xf32> to vector<8x16xbf16>
    %cst_23 = arith.constant dense<0.000000e+00> : vector<64x16xf32>
    %92 = tpu.matmul %84, %89, %cst_23 {dimension_numbers = #tpu.dot_dimension_numbers<[1], [0], [0], [1], [0, 0, 1, 1], [], []>} : vector<64x8xbf16>, vector<8x16xbf16>, vector<64x16xf32> -> vector<64x16xf32>
    %cst_24 = arith.constant dense<0xFF800000> : vector<64xf32>
    %93 = vector.multi_reduction <maximumf>, %92, %cst_24 [1] : vector<64x16xf32> to vector<64xf32>
    %94 = vector.shape_cast %93 : vector<64xf32> to vector<64x1xf32>
    %95 = vector.broadcast %94 : vector<64x1xf32> to vector<64x16xf32>
    %96 = arith.subf %92, %95 : vector<64x16xf32>
    %97 = math.exp %96 : vector<64x16xf32>
    %cst_25 = arith.constant dense<0.000000e+00> : vector<64xf32>
    %98 = vector.multi_reduction <add>, %97, %cst_25 [1] : vector<64x16xf32> to vector<64xf32>
    %99 = vector.shape_cast %98 : vector<64xf32> to vector<64x1xf32>
    %100 = tpu.reciprocal %99 {approx = true} : vector<64x1xf32> -> vector<64x1xf32>
    %101 = vector.broadcast %100 : vector<64x1xf32> to vector<64x16xf32>
    %102 = arith.mulf %97, %101 : vector<64x16xf32>
    %103 = arith.truncf %102 : vector<64x16xf32> to vector<64x16xbf16>
    %cst_26 = arith.constant dense<0.000000e+00> : vector<64x8xf32>
    %104 = tpu.matmul %103, %91, %cst_26 {dimension_numbers = #tpu.dot_dimension_numbers<[1], [1], [0], [0], [0, 0, 1, 0], [], []>} : vector<64x16xbf16>, vector<8x16xbf16>, vector<64x8xf32> -> vector<64x8xf32>
    %105 = tpu.concatenate %41, %62, %83, %104 in 1 : vector<64x8xf32>, vector<64x8xf32>, vector<64x8xf32>, vector<64x8xf32> -> vector<64x32xf32>
    %c0_27 = arith.constant 0 : index
    %c0_28 = arith.constant 0 : index
    %c0_29 = arith.constant 0 : index
    %106 = vector.load %arg5[%c0_27, %c0_28, %c0_29] : memref<1x64x32xf32, #tpu.memory_space<vmem>>, vector<1x64x32xf32>
    %107 = vector.shape_cast %106 : vector<1x64x32xf32> to vector<64x32xf32>
    %108 = vector.shape_cast %105 : vector<64x32xf32> to vector<1x64x32xf32>
    tpu.vector_store %arg5[%c0_27, %c0_28, %c0_29], %108 {strides = array<i32>} : memref<1x64x32xf32, #tpu.memory_space<vmem>>, vector<1x64x32xf32>,
    return
  }
  func.func @transform_0(%arg0: i32) -> (i32, i32, i32) {
    %c0_i32 = arith.constant 0 : i32
    %c0_i32_0 = arith.constant 0 : i32
    %c0_i32_1 = arith.constant 0 : i32
    return %arg0, %c0_i32, %c0_i32_0 : i32, i32, i32
  }
  func.func @transform_1(%arg0: i32) -> (i32, i32) {
    %c0_i32 = arith.constant 0 : i32
    %c0_i32_0 = arith.constant 0 : i32
    %c0_i32_1 = arith.constant 0 : i32
    return %c0_i32, %c0_i32_0 : i32, i32
  }
  func.func @transform_2(%arg0: i32) -> (i32, i32) {
    %c0_i32 = arith.constant 0 : i32
    %c0_i32_0 = arith.constant 0 : i32
    %c0_i32_1 = arith.constant 0 : i32
    return %c0_i32, %c0_i32_0 : i32, i32
  }
  func.func @transform_3(%arg0: i32) -> i32 {
    %c0_i32 = arith.constant 0 : i32
    %c0_i32_0 = arith.constant 0 : i32
    return %c0_i32 : i32
  }
  func.func @transform_4(%arg0: i32) -> (i32, i32, i32) {
    %c0_i32 = arith.constant 0 : i32
    %c0_i32_0 = arith.constant 0 : i32
    %c0_i32_1 = arith.constant 0 : i32
    return %arg0, %c0_i32, %c0_i32_0 : i32, i32, i32
  }
}

</mosaic_0001>

<llo_original>
// kernel: tpu_custom_call.1
$region0: #{tpu_custom_call.1}
  #allocation0 [shape = 'u32[]', space=smem, size = 0x4, offset = 0x4, fixed_abs, tag = 'smem constant byte address 0x4 - core index']
  #allocation1 [shape = 'u32[144,128]{1,0:T(1,128)}', space=vmem, size = 0x12000, scoped, tag = 'internal scratch']
  %s0 = inlined_call_operand.vmem [shape: bf16[2,64,32], index: 0, kind: input, shape index: {}]
  %s1 = inlined_call_operand.vmem [shape: bf16[32,96], index: 1, kind: input, shape index: {}]
  %s2 = inlined_call_operand.vmem [shape: bf16[64,16], index: 2, kind: input, shape index: {}]
  %s3 = inlined_call_operand.vmem [shape: f32[4], index: 3, kind: input, shape index: {}]
  %s4 = inlined_call_operand.vmem [shape: f32[2,64,32], index: 4, kind: output, shape index: {}]
  %s5 = sld [smem:[#allocation0]]
  $region53: #{tpu_custom_call.1} parent=0
    _
  %s7 = ssub.s32 1, %s5
  %s8 = scalar_select 0, %s7, %s5
  $region1: #{tpu_custom_call.1} parent=0
    #allocation2 [shape = 'u8[512]{0}', space=smem, size = 0x200, scoped, tag = 'input window, operand 3, single buffered']
    #allocation3 [shape = 's32[2]{0}', space=sflag, size = 0x8, scoped, tag = 'scoped memory for tpu_custom_call.1']
    %9 = vsyncpa [#allocation3], 0
    loop: start=0, step=1, limit=4
    $region2: #{tpu_custom_call.1} parent=1 // loop_pre_header
      _
    $region3: #{tpu_custom_call.1} parent=1 // loop_header
      %s11 = sphi 0, %s15
      %p12 = scmp.ge.s32.totalorder %s11, 4
      %s21 = sphi 0, %s23
      %s24 = sphi 0, %s21
      %s25 = sphi 0, %s24
      %s41 = sphi 0, %s25
      %s45 = sphi 0, %s45
      %s47 = sphi 0, %s45
      %s48 = sphi 0, %s47
      %s62 = sphi 0, %s48
      %s66 = sphi 0, %s66
      %s68 = sphi 0, %s66
      %s69 = sphi 0, %s68
      %s83 = sphi 0, %s69
      %s87 = sphi 0, %s87
      %s89 = sphi 0, %s87
      %s90 = sphi 0, %s89
      %s104 = sphi 0, %s90
      %s110 = sphi 0, %s112
      %s113 = sphi 0, %s110
      %s114 = sphi 0, %s113
      %s130 = sphi 0, %s114
    $region4: #{tpu_custom_call.1} parent=1 // loop_header_branch
      %14 = sbr.rel (%p12) target = $region8
    $region5: #{tpu_custom_call.1} parent=1 // loop_body
      %s16 = ssub.s32 %s11, 1
      %s17 = ssub.s32 %s11, 2
      %s18 = sadd.s32 %s11, 1
      %s19 = ssub.s32 %s11, %s18
      %p20 = scmp.eq.s32.totalorder %s19, 0
      %s22 = sadd.s32 %s21, 1
      %s23 = scalar_select %p20, %s21, %s22
      %p26 = pneg %p20
      %p27 = scmp.eq.s32.totalorder %s11, 1
      %p28 = por %p26, %p27
      %p29 = scmp.ne.s32.totalorder %s21, %s24
      %p30 = scmp.eq.s32.totalorder %s11, 0
      %p31 = por %p29, %p30
      %p32 = scmp.ne.s32.totalorder %s21, %s24
      %p33 = scmp.eq.s32.totalorder %s16, 1
      %p34 = por %p32, %p33
      %p35 = scmp.ne.s32.totalorder %s24, %s25
      %p36 = scmp.eq.s32.totalorder %s16, 0
      %p37 = por %p35, %p36
      %p38 = scmp.ne.s32.totalorder %s24, %s25
      %p39 = scmp.eq.s32.totalorder %s17, 1
      %p40 = por %p38, %p39
      %p42 = scmp.ne.s32.totalorder %s25, %s41
      %p43 = scmp.eq.s32.totalorder %s17, 0
      %p44 = por %p42, %p43
      %s46 = sadd.s32 %s45, 1
      %p49 = scmp.eq.s32.totalorder %s11, 1
      %p50 = scmp.ne.s32.totalorder %s45, %s47
      %p51 = scmp.eq.s32.totalorder %s11, 0
      %p52 = por %p50, %p51
      %p53 = scmp.ne.s32.totalorder %s45, %s47
      %p54 = scmp.eq.s32.totalorder %s16, 1
      %p55 = por %p53, %p54
      %p56 = scmp.ne.s32.totalorder %s47, %s48
      %p57 = scmp.eq.s32.totalorder %s16, 0
      %p58 = por %p56, %p57
      %p59 = scmp.ne.s32.totalorder %s47, %s48
      %p60 = scmp.eq.s32.totalorder %s17, 1
      %p61 = por %p59, %p60
      %p63 = scmp.ne.s32.totalorder %s48, %s62
      %p64 = scmp.eq.s32.totalorder %s17, 0
      %p65 = por %p63, %p64
      %s67 = sadd.s32 %s66, 1
      %p70 = scmp.eq.s32.totalorder %s11, 1
      %p71 = scmp.ne.s32.totalorder %s66, %s68
      %p72 = scmp.eq.s32.totalorder %s11, 0
      %p73 = por %p71, %p72
      %p74 = scmp.ne.s32.totalorder %s66, %s68
      %p75 = scmp.eq.s32.totalorder %s16, 1
      %p76 = por %p74, %p75
      %p77 = scmp.ne.s32.totalorder %s68, %s69
      %p78 = scmp.eq.s32.totalorder %s16, 0
      %p79 = por %p77, %p78
      %p80 = scmp.ne.s32.totalorder %s68, %s69
      %p81 = scmp.eq.s32.totalorder %s17, 1
      %p82 = por %p80, %p81
      %p84 = scmp.ne.s32.totalorder %s69, %s83
      %p85 = scmp.eq.s32.totalorder %s17, 0
      %p86 = por %p84, %p85
      %s88 = sadd.s32 %s87, 1
      %p91 = scmp.eq.s32.totalorder %s11, 1
      %p92 = scmp.ne.s32.totalorder %s87, %s89
      %p93 = scmp.eq.s32.totalorder %s11, 0
      %p94 = por %p92, %p93
      %p95 = scmp.ne.s32.totalorder %s87, %s89
      %p96 = scmp.eq.s32.totalorder %s16, 1
      %p97 = por %p95, %p96
      %p98 = scmp.ne.s32.totalorder %s89, %s90
      %p99 = scmp.eq.s32.totalorder %s16, 0
      %p100 = por %p98, %p99
      %p101 = scmp.ne.s32.totalorder %s89, %s90
      %p102 = scmp.eq.s32.totalorder %s17, 1
      %p103 = por %p101, %p102
      %p105 = scmp.ne.s32.totalorder %s90, %s104
      %p106 = scmp.eq.s32.totalorder %s17, 0
      %p107 = por %p105, %p106
      %s108 = ssub.s32 %s11, %s18
      %p109 = scmp.eq.s32.totalorder %s108, 0
      %s111 = sadd.s32 %s110, 1
      %s112 = scalar_select %p109, %s110, %s111
      %p115 = pneg %p109
      %p116 = scmp.eq.s32.totalorder %s11, 1
      %p117 = por %p115, %p116
      %p118 = scmp.ne.s32.totalorder %s110, %s113
      %p119 = scmp.eq.s32.totalorder %s11, 0
      %p120 = por %p118, %p119
      %p121 = scmp.ne.s32.totalorder %s110, %s113
      %p122 = scmp.eq.s32.totalorder %s16, 1
      %p123 = por %p121, %p122
      %p124 = scmp.ne.s32.totalorder %s113, %s114
      %p125 = scmp.eq.s32.totalorder %s16, 0
      %p126 = por %p124, %p125
      %p127 = scmp.ne.s32.totalorder %s113, %s114
      %p128 = scmp.eq.s32.totalorder %s17, 1
      %p129 = por %p127, %p128
      %p131 = scmp.ne.s32.totalorder %s114, %s130
      %p132 = scmp.eq.s32.totalorder %s17, 0
      %p133 = por %p131, %p132
      %p134 = scmp.le.s32.totalorder 1, %s11
      %p135 = scmp.lt.s32.totalorder %s11, 3
      %p136 = pnand %p134, %p135
      %p137 = pneg %p136
      // Predicated region
      $region9: #{tpu_custom_call.1} parent=5 // pred_check
        _
      $region10: #{tpu_custom_call.1} parent=5 // pred_check_branch
        %139 = sbr.rel (%p136) target = $region12
      $region11: #{tpu_custom_call.1} parent=5 // pred_region
        %s140 = ssub.s32 %s11, 1
        // Predicated region
        $region13: #{tpu_custom_call.1} parent=11 // pred_check
          %p141 = pneg %p58
        $region14: #{tpu_custom_call.1} parent=11 // pred_check_branch
          %143 = sbr.rel (%p141) target = $region16
        $region15: #{tpu_custom_call.1} parent=11 // pred_region
          _
        $region16: #{tpu_custom_call.1} parent=11 // pred_fallthru
          _
        // Predicated region
        $region17: #{tpu_custom_call.1} parent=11 // pred_check
          %p144 = pneg %p79
        $region18: #{tpu_custom_call.1} parent=11 // pred_check_branch
          %146 = sbr.rel (%p144) target = $region20
        $region19: #{tpu_custom_call.1} parent=11 // pred_region
          _
        $region20: #{tpu_custom_call.1} parent=11 // pred_fallthru
          _
        // Predicated region
        $region21: #{tpu_custom_call.1} parent=11 // pred_check
          %p147 = pneg %p100
        $region22: #{tpu_custom_call.1} parent=11 // pred_check_branch
          %149 = sbr.rel (%p147) target = $region24
        $region23: #{tpu_custom_call.1} parent=11 // pred_region
          %s151 = ssub.s32 16, 16
          %152 = vsyncadd [#allocation3], %s151
          %s154 = sshll.u32 %s3, 4
          %s155 = int_to_ptr.vmem [resolvable:$true] %s154
          %157 = dma.vmem_to_smem %s155, 16, [#allocation2], [#allocation3]
        $region24: #{tpu_custom_call.1} parent=11 // pred_fallthru
          _
      $region12: #{tpu_custom_call.1} parent=5 // pred_fallthru
        _
      %p158 = scmp.lt.s32.totalorder %s11, 2
      // Predicated region
      $region25: #{tpu_custom_call.1} parent=5 // pred_check
        %p159 = pneg %p158
      $region26: #{tpu_custom_call.1} parent=5 // pred_check_branch
        %161 = sbr.rel (%p159) target = $region28
      $region27: #{tpu_custom_call.1} parent=5 // pred_region
        // Predicated region
        $region29: #{tpu_custom_call.1} parent=27 // pred_check
          %p162 = pneg %p31
        $region30: #{tpu_custom_call.1} parent=27 // pred_check_branch
          %164 = sbr.rel (%p162) target = $region32
        $region31: #{tpu_custom_call.1} parent=27 // pred_region
          %p165 = scmp.lt.s32.totalorder %s11, 1
          %s166 = scalar_select %p165, %s11, 1
          %s167 = smul.addr %s166, 8
          %s168 = smul.addr %s167, 4
          %s169 = scalar_lea.vmem %s0, %s168
        $region32: #{tpu_custom_call.1} parent=27 // pred_fallthru
          _
      $region28: #{tpu_custom_call.1} parent=5 // pred_fallthru
        _
      %p170 = scmp.le.s32.totalorder 1, %s11
      %p171 = scmp.lt.s32.totalorder %s11, 3
      %p172 = pnand %p170, %p171
      %p173 = pneg %p172
      // Predicated region
      $region33: #{tpu_custom_call.1} parent=5 // pred_check
        _
      $region34: #{tpu_custom_call.1} parent=5 // pred_check_branch
        %175 = sbr.rel (%p172) target = $region36
      $region35: #{tpu_custom_call.1} parent=5 // pred_region
        %s176 = ssub.s32 %s11, 1
        // Predicated region
        $region37: #{tpu_custom_call.1} parent=35 // pred_check
          %p177 = pneg %p100
        $region38: #{tpu_custom_call.1} parent=35 // pred_check_branch
          %179 = sbr.rel (%p177) target = $region40
        $region39: #{tpu_custom_call.1} parent=35 // pred_region
          %180 = dma.done [#allocation3], 16
        $region40: #{tpu_custom_call.1} parent=35 // pred_fallthru
          _
        %181 = sfence
        %p182 = scmp.lt.s32.totalorder %s16, 1
        %s183 = scalar_select %p182, %s16, 1
        %s184 = smul.addr %s183, 8
        %s185 = smul.addr %s184, 4
        %s186 = scalar_lea.vmem %s0, %s185
        %p187 = pneg %p37
        %p188 = pneg %p34
        %p189 = pneg %p58
        %p190 = pneg %p55
        %p191 = pneg %p79
        %p192 = pneg %p76
        %p193 = pneg %p100
        %p194 = pneg %p97
        %p195 = pneg %p126
        %p196 = pneg %p123
        %p197 = scmp.lt.s32.totalorder %s16, 1
        %s198 = scalar_select %p197, %s16, 1
        %s199 = smul.addr %s198, 8
        %s200 = smul.addr %s199, 8
        %s201 = scalar_lea.vmem %s4, %s200
        %p202 = scmp.lt.s32.totalorder %s16, 1
        %s203 = scalar_select %p202, %s16, 1
        %s204 = smul.addr %s203, 8
        %s205 = smul.addr %s204, 4
        %s206 = scalar_lea.vmem %s0, %s205
        %p207 = scmp.lt.s32.totalorder %s16, 1
        %s208 = scalar_select %p207, %s16, 1
        %s209 = smul.addr %s208, 8
        %s210 = smul.addr %s209, 8
        %s211 = scalar_lea.vmem %s4, %s210
        %v213 = vld [vmem:[%s206] sm:$0xf]
        %v214 = vld [vmem:[%s206 + $0x4] sm:$0xf]
        %v215 = vld [vmem:[%s206 + $0x8] sm:$0xf]
        %v216 = vld [vmem:[%s206 + $0xc] sm:$0xf]
        %v217 = vld [vmem:[%s206 + $0x10] sm:$0xf]
        %v218 = vld [vmem:[%s206 + $0x14] sm:$0xf]
        %v219 = vld [vmem:[%s206 + $0x18] sm:$0xf]
        %v220 = vld [vmem:[%s206 + $0x1c] sm:$0xf]
        %v221 = vld [vmem:[%s1] sm:$0xf]
        %v222 = vld [vmem:[%s1 + $0x4] sm:$0xf]
        %v223 = vld [vmem:[%s1 + $0x8] sm:$0xf]
        %v224 = vld [vmem:[%s1 + $0xc] sm:$0xf]
        %v225 = vld [vmem:[%s2] sm:$0xf]
        %v226 = vld [vmem:[%s2 + $0x4] sm:$0xf]
        %v227 = vld [vmem:[%s2 + $0x8] sm:$0xf]
        %v228 = vld [vmem:[%s2 + $0xc] sm:$0xf]
        %v229 = vld [vmem:[%s2 + $0x10] sm:$0xf]
        %v230 = vld [vmem:[%s2 + $0x14] sm:$0xf]
        %v231 = vld [vmem:[%s2 + $0x18] sm:$0xf]
        %v232 = vld [vmem:[%s2 + $0x1c] sm:$0xf]
        %v241 = vunpack.c.l.b16 %v213
        %v242 = vunpack.c.l.b16 %v214
        %v243 = vunpack.c.l.b16 %v215
        %v244 = vunpack.c.l.b16 %v216
        %v245 = vunpack.c.l.b16 %v217
        %v246 = vunpack.c.l.b16 %v218
        %v247 = vunpack.c.l.b16 %v219
        %v248 = vunpack.c.l.b16 %v220
        %v249 = vpack.c.b16 %v242, %v241
        %v250 = vpack.c.b16 %v244, %v243
        %v251 = vpack.c.b16 %v246, %v245
        %v252 = vpack.c.b16 %v248, %v247
        %v257 = vunpack.c.l.b16 %v221
        %v258 = vunpack.c.l.b16 %v222
        %v259 = vunpack.c.l.b16 %v223
        %v260 = vunpack.c.l.b16 %v224
        %v261 = vpack.c.b16 %v258, %v257
        %v262 = vpack.c.b16 %v260, %v259
        %vm265 = vcmask 261120
        %v267 = vsel %vm265, %v249, 0
        %v270 = vsel %vm265, %v250, 0
        %v273 = vsel %vm265, %v251, 0
        %v276 = vsel %vm265, %v252, 0
        %278 = vmatprep.subr.bf16.mxu0 0
        %279 = vmatpush1.bf16.msra.mxu0 %v261
        %280 = vmatprep.subr.bf16.mxu0 0
        %281 = vmatpush1.bf16.msra.mxu0 %v262
        %282 = vmatprep.subr.bf16.mxu0 0
        %283 = vmatpush1.bf16.msra.mxu0 0
        %284 = vmatprep.subr.bf16.mxu0 0
        %285 = vmatpush1.bf16.msra.mxu0 0
        %286 = vmatprep.subr.bf16.mxu0 0
        %287 = vmatpush1.bf16.msra.mxu0 0
        %288 = vmatprep.subr.bf16.mxu0 0
        %289 = vmatpush1.bf16.msra.mxu0 0
        %290 = vmatprep.subr.bf16.mxu0 0
        %291 = vmatpush1.bf16.msra.mxu0 0
        %292 = vmatprep.subr.bf16.mxu0 0
        %293 = vmatpush1.bf16.msra.mxu0 0
        %294 = vmatprep.subr.bf16.mxu0 0
        %295 = vmatpush1.bf16.msra.mxu0 0
        %296 = vmatprep.subr.bf16.mxu0 0
        %297 = vmatpush1.bf16.msra.mxu0 0
        %298 = vmatprep.subr.bf16.mxu0 0
        %299 = vmatpush1.bf16.msra.mxu0 0
        %300 = vmatprep.subr.bf16.mxu0 0
        %301 = vmatpush1.bf16.msra.mxu0 0
        %302 = vmatprep.subr.bf16.mxu0 0
        %303 = vmatpush1.bf16.msra.mxu0 0
        %304 = vmatprep.subr.bf16.mxu0 0
        %305 = vmatpush1.bf16.msra.mxu0 0
        %306 = vmatprep.subr.bf16.mxu0 0
        %307 = vmatpush1.bf16.msra.mxu0 0
        %308 = vmatprep.subr.bf16.mxu0 0
        %309 = vmatpush1.bf16.msra.mxu0 0
        %310 = vmatprep.mubr.bf16.mxu0 0
        %311 = vmatmul.mubr.bf16.gmra.mrb[0].mxu0 %v267
        %v312 = vpop.f32.mrb[0].mxu0
        %v313 = vadd.f32 0.0, %v312
        %v314 = vpop.f32.mrb[0].mxu0
        %v315 = vpop.f32.mrb[0].mxu0
        %v316 = vadd.f32 0.0, %v315
        %v317 = vpop.f32.mrb[0].mxu0
        %318 = vmatprep.mubr.bf16.mxu0 0
        %319 = vmatmul.mubr.bf16.gmra.mrb[0].mxu0 %v270
        %v320 = vpop.f32.mrb[0].mxu0
        %v321 = vadd.f32 0.0, %v320
        %v322 = vpop.f32.mrb[0].mxu0
        %v323 = vpop.f32.mrb[0].mxu0
        %v324 = vadd.f32 0.0, %v323
        %v325 = vpop.f32.mrb[0].mxu0
        %326 = vmatprep.mubr.bf16.mxu0 0
        %327 = vmatmul.mubr.bf16.gmra.mrb[0].mxu0 %v273
        %v328 = vpop.f32.mrb[0].mxu0
        %v329 = vadd.f32 0.0, %v328
        %v330 = vpop.f32.mrb[0].mxu0
        %v331 = vpop.f32.mrb[0].mxu0
        %v332 = vadd.f32 0.0, %v331
        %v333 = vpop.f32.mrb[0].mxu0
        %334 = vmatprep.mubr.bf16.mxu0 0
        %335 = vmatmul.mubr.bf16.gmra.mrb[0].mxu0 %v276
        %v336 = vpop.f32.mrb[0].mxu0
        %v337 = vadd.f32 0.0, %v336
        %v338 = vpop.f32.mrb[0].mxu0
        %v339 = vpop.f32.mrb[0].mxu0
        %v340 = vadd.f32 0.0, %v339
        %v341 = vpop.f32.mrb[0].mxu0
        %342 = vdwg.mxu0
        %v343 = vmul.f32 %v313, %v313
        %v344 = vmul.f32 %v316, %v316
        %v345 = vmul.f32 %v321, %v321
        %v346 = vmul.f32 %v324, %v324
        %v347 = vmul.f32 %v329, %v329
        %v348 = vmul.f32 %v332, %v332
        %v349 = vmul.f32 %v337, %v337
        %v350 = vmul.f32 %v340, %v340
        %v351 = vsel %vm265, %v343, 0.0
        %v352 = vsel %vm265, %v344, 0.0
        %v353 = vadd.f32 %v351, %v352
        %v354 = vsel %vm265, %v345, 0.0
        %v355 = vadd.f32 %v353, %v354
        %v356 = vsel %vm265, %v346, 0.0
        %v357 = vadd.f32 %v355, %v356
        %v358 = vsel %vm265, %v347, 0.0
        %v359 = vadd.f32 %v357, %v358
        %v360 = vsel %vm265, %v348, 0.0
        %v361 = vadd.f32 %v359, %v360
        %v362 = vsel %vm265, %v349, 0.0
        %v363 = vadd.f32 %v361, %v362
        %v364 = vsel %vm265, %v350, 0.0
        %v365 = vadd.f32 %v363, %v364
        %v366 = vrot.slane %v365, 4
        %v367 = vadd.f32 %v365, %v366
        %v368 = vrot.slane %v367, 2
        %v369 = vadd.f32 %v367, %v368
        %v370 = vrot.slane %v369, 1
        %v371 = vadd.f32 %v369, %v370
        %v372 = vmax.f32 %v371, 1e-24
        %v373 = vrsqrt.pop %v372
        %v374 = vmul.f32 %v313, %v373
        %v375 = vmul.f32 %v316, %v373
        %v376 = vmul.f32 %v321, %v373
        %v377 = vmul.f32 %v324, %v373
        %v378 = vmul.f32 %v329, %v373
        %v379 = vmul.f32 %v332, %v373
        %v380 = vmul.f32 %v337, %v373
        %v381 = vmul.f32 %v340, %v373
        %v382 = vpack.c.bf16 %v375, %v374
        %v383 = vpack.c.bf16 %v377, %v376
        %v384 = vpack.c.bf16 %v379, %v378
        %v385 = vpack.c.bf16 %v381, %v380
        %v386 = vpack.c.bf16 %v316, %v313
        %v387 = vpack.c.bf16 %v324, %v321
        %v388 = vpack.c.bf16 %v332, %v329
        %v389 = vpack.c.bf16 %v340, %v337
        %394 = vrot.lane.b32.xlu0 %v386, 96
        %v395 = vpop.permute.xlu0 %394
        %396 = vrot.lane.b32.xlu0 %v387, 96
        %v397 = vpop.permute.xlu0 %396
        %398 = vrot.lane.b32.xlu0 %v388, 96
        %v399 = vpop.permute.xlu0 %398
        %400 = vrot.lane.b32.xlu0 %v389, 96
        %v401 = vpop.permute.xlu0 %400
        %406 = vxpose.xlu0.c.b16.start [1/8] %v395, 128
        %407 = vxpose.xlu0.c.b16.cont [2/8] %v397, 128
        %408 = vxpose.xlu0.c.b16.cont [3/8] %v399, 128
        %409 = vxpose.xlu0.c.b16.cont [4/8] %v401, 128
        %410 = vxpose.xlu0.c.b16.cont [5/8] 0, 128
        %411 = vxpose.xlu0.c.b16.cont [6/8] 0, 128
        %412 = vxpose.xlu0.c.b16.cont [7/8] 0, 128
        %413 = vxpose.xlu0.c.b16.end [8/8] 0, 128
        %v414 = vpop.trf.xlu0
        %v415 = vpop.trf.xlu0
        %v416 = vpop.trf.xlu0
        %v417 = vpop.trf.xlu0
        %v418 = vpop.trf.xlu0
        %v419 = vpop.trf.xlu0
        %v420 = vpop.trf.xlu0
        %v421 = vpop.trf.xlu0
        %v430 = vunpack.c.l.b16 %v225
        %v431 = vunpack.c.l.b16 %v226
        %v432 = vunpack.c.l.b16 %v227
        %v433 = vunpack.c.l.b16 %v228
        %v434 = vunpack.c.l.b16 %v229
        %v435 = vunpack.c.l.b16 %v230
        %v436 = vunpack.c.l.b16 %v231
        %v437 = vunpack.c.l.b16 %v232
        %v438 = vpack.c.b16 %v431, %v430
        %v439 = vpack.c.b16 %v433, %v432
        %v440 = vpack.c.b16 %v435, %v434
        %v441 = vpack.c.b16 %v437, %v436
        %vm446 = vcmask 523264
        %v448 = vsel %vm446, %v414, 0
        %v451 = vsel %vm446, %v415, 0
        %453 = vmatprep.subr.bf16.mxu0 0
        %454 = vmatpush1.bf16.msra.mxu0 %v438
        %455 = vmatprep.subr.bf16.mxu0 0
        %456 = vmatpush1.bf16.msra.mxu0 %v439
        %457 = vmatprep.subr.bf16.mxu0 0
        %458 = vmatpush1.bf16.msra.mxu0 %v440
        %459 = vmatprep.subr.bf16.mxu0 0
        %460 = vmatpush1.bf16.msra.mxu0 %v441
        %461 = vmatprep.subr.bf16.mxu0 0
        %462 = vmatpush1.bf16.msra.mxu0 0
        %463 = vmatprep.subr.bf16.mxu0 0
        %464 = vmatpush1.bf16.msra.mxu0 0
        %465 = vmatprep.subr.bf16.mxu0 0
        %466 = vmatpush1.bf16.msra.mxu0 0
        %467 = vmatprep.subr.bf16.mxu0 0
        %468 = vmatpush1.bf16.msra.mxu0 0
        %469 = vmatprep.subr.bf16.mxu0 0
        %470 = vmatpush1.bf16.msra.mxu0 0
        %471 = vmatprep.subr.bf16.mxu0 0
        %472 = vmatpush1.bf16.msra.mxu0 0
        %473 = vmatprep.subr.bf16.mxu0 0
        %474 = vmatpush1.bf16.msra.mxu0 0
        %475 = vmatprep.subr.bf16.mxu0 0
        %476 = vmatpush1.bf16.msra.mxu0 0
        %477 = vmatprep.subr.bf16.mxu0 0
        %478 = vmatpush1.bf16.msra.mxu0 0
        %479 = vmatprep.subr.bf16.mxu0 0
        %480 = vmatpush1.bf16.msra.mxu0 0
        %481 = vmatprep.subr.bf16.mxu0 0
        %482 = vmatpush1.bf16.msra.mxu0 0
        %483 = vmatprep.subr.bf16.mxu0 0
        %484 = vmatpush1.bf16.msra.mxu0 0
        %485 = vmatprep.mubr.bf16.mxu0 0
        %486 = vmatmul.mubr.bf16.gmra.mrb[0].mxu0 %v448
        %v487 = vpop.f32.mrb[0].mxu0
        %v488 = vadd.f32 0.0, %v487
        %v489 = vpop.f32.mrb[0].mxu0
        %v490 = vpop.f32.mrb[0].mxu0
        %v491 = vadd.f32 0.0, %v490
        %v492 = vpop.f32.mrb[0].mxu0
        %493 = vmatprep.mubr.bf16.mxu0 0
        %494 = vmatmul.mubr.bf16.gmra.mrb[0].mxu0 %v451
        %v495 = vpop.f32.mrb[0].mxu0
        %v496 = vadd.f32 0.0, %v495
        %v497 = vpop.f32.mrb[0].mxu0
        %v498 = vpop.f32.mrb[0].mxu0
        %v499 = vadd.f32 0.0, %v498
        %v500 = vpop.f32.mrb[0].mxu0
        %501 = vdwg.mxu0
        %502 = vrot.lane.b32.xlu0 %v386, 64
        %v503 = vpop.permute.xlu0 %502
        %504 = vrot.lane.b32.xlu0 %v387, 64
        %v505 = vpop.permute.xlu0 %504
        %506 = vrot.lane.b32.xlu0 %v388, 64
        %v507 = vpop.permute.xlu0 %506
        %508 = vrot.lane.b32.xlu0 %v389, 64
        %v509 = vpop.permute.xlu0 %508
        %514 = vxpose.xlu0.c.b16.start [1/8] %v503, 128
        %515 = vxpose.xlu0.c.b16.cont [2/8] %v505, 128
        %516 = vxpose.xlu0.c.b16.cont [3/8] %v507, 128
        %517 = vxpose.xlu0.c.b16.cont [4/8] %v509, 128
        %518 = vxpose.xlu0.c.b16.cont [5/8] 0, 128
        %519 = vxpose.xlu0.c.b16.cont [6/8] 0, 128
        %520 = vxpose.xlu0.c.b16.cont [7/8] 0, 128
        %521 = vxpose.xlu0.c.b16.end [8/8] 0, 128
        %v522 = vpop.trf.xlu0
        %v523 = vpop.trf.xlu0
        %v524 = vpop.trf.xlu0
        %v525 = vpop.trf.xlu0
        %v526 = vpop.trf.xlu0
        %v527 = vpop.trf.xlu0
        %v528 = vpop.trf.xlu0
        %v529 = vpop.trf.xlu0
        %v531 = vsel %vm446, %v522, 0
        %v534 = vsel %vm446, %v523, 0
        %536 = vmatprep.subr.bf16.mxu0 0
        %537 = vmatpush1.bf16.msra.mxu0 %v438
        %538 = vmatprep.subr.bf16.mxu0 0
        %539 = vmatpush1.bf16.msra.mxu0 %v439
        %540 = vmatprep.subr.bf16.mxu0 0
        %541 = vmatpush1.bf16.msra.mxu0 %v440
        %542 = vmatprep.subr.bf16.mxu0 0
        %543 = vmatpush1.bf16.msra.mxu0 %v441
        %544 = vmatprep.subr.bf16.mxu0 0
        %545 = vmatpush1.bf16.msra.mxu0 0
        %546 = vmatprep.subr.bf16.mxu0 0
        %547 = vmatpush1.bf16.msra.mxu0 0
        %548 = vmatprep.subr.bf16.mxu0 0
        %549 = vmatpush1.bf16.msra.mxu0 0
        %550 = vmatprep.subr.bf16.mxu0 0
        %551 = vmatpush1.bf16.msra.mxu0 0
        %552 = vmatprep.subr.bf16.mxu0 0
        %553 = vmatpush1.bf16.msra.mxu0 0
        %554 = vmatprep.subr.bf16.mxu0 0
        %555 = vmatpush1.bf16.msra.mxu0 0
        %556 = vmatprep.subr.bf16.mxu0 0
        %557 = vmatpush1.bf16.msra.mxu0 0
        %558 = vmatprep.subr.bf16.mxu0 0
        %559 = vmatpush1.bf16.msra.mxu0 0
        %560 = vmatprep.subr.bf16.mxu0 0
        %561 = vmatpush1.bf16.msra.mxu0 0
        %562 = vmatprep.subr.bf16.mxu0 0
        %563 = vmatpush1.bf16.msra.mxu0 0
        %564 = vmatprep.subr.bf16.mxu0 0
        %565 = vmatpush1.bf16.msra.mxu0 0
        %566 = vmatprep.subr.bf16.mxu0 0
        %567 = vmatpush1.bf16.msra.mxu0 0
        %568 = vmatprep.mubr.bf16.mxu0 0
        %569 = vmatmul.mubr.bf16.gmra.mrb[0].mxu0 %v531
        %v570 = vpop.f32.mrb[0].mxu0
        %v571 = vadd.f32 0.0, %v570
        %v572 = vpop.f32.mrb[0].mxu0
        %v573 = vpop.f32.mrb[0].mxu0
        %v574 = vadd.f32 0.0, %v573
        %v575 = vpop.f32.mrb[0].mxu0
        %576 = vmatprep.mubr.bf16.mxu0 0
        %577 = vmatmul.mubr.bf16.gmra.mrb[0].mxu0 %v534
        %v578 = vpop.f32.mrb[0].mxu0
        %v579 = vadd.f32 0.0, %v578
        %v580 = vpop.f32.mrb[0].mxu0
        %v581 = vpop.f32.mrb[0].mxu0
        %v582 = vadd.f32 0.0, %v581
        %v583 = vpop.f32.mrb[0].mxu0
        %584 = vdwg.mxu0
        %s585 = sld [smem:[#allocation2]]
        %v586 = vstv %s585
        %v587 = vmul.f32 %v488, %v586
        %v588 = vpack.c.bf16 %v587, %v587
        %v589 = vpack.c.bf16 %v571, %v571
        %vm590 = vcmask 64512
        %v592 = vsel %vm590, %v382, 0
        %v595 = vsel %vm590, %v383, 0
        %v598 = vsel %vm590, %v384, 0
        %v601 = vsel %vm590, %v385, 0
        %vm603 = vcmask 1043456
        %v605 = vsel %vm603, %v588, 0
        %607 = vmatprep.subr.bf16.mxu0 0
        %608 = vmatpush1.bf16.msra.mxu0 %v605
        %609 = vmatprep.subr.bf16.mxu0 0
        %610 = vmatpush1.bf16.msra.mxu0 0
        %611 = vmatprep.subr.bf16.mxu0 0
        %612 = vmatpush1.bf16.msra.mxu0 0
        %613 = vmatprep.subr.bf16.mxu0 0
        %614 = vmatpush1.bf16.msra.mxu0 0
        %615 = vmatprep.subr.bf16.mxu0 0
        %616 = vmatpush1.bf16.msra.mxu0 0
        %617 = vmatprep.subr.bf16.mxu0 0
        %618 = vmatpush1.bf16.msra.mxu0 0
        %619 = vmatprep.subr.bf16.mxu0 0
        %620 = vmatpush1.bf16.msra.mxu0 0
        %621 = vmatprep.subr.bf16.mxu0 0
        %622 = vmatpush1.bf16.msra.mxu0 0
        %623 = vmatprep.subr.bf16.mxu0 0
        %624 = vmatpush1.bf16.msra.mxu0 0
        %625 = vmatprep.subr.bf16.mxu0 0
        %626 = vmatpush1.bf16.msra.mxu0 0
        %627 = vmatprep.subr.bf16.mxu0 0
        %628 = vmatpush1.bf16.msra.mxu0 0
        %629 = vmatprep.subr.bf16.mxu0 0
        %630 = vmatpush1.bf16.msra.mxu0 0
        %631 = vmatprep.subr.bf16.mxu0 0
        %632 = vmatpush1.bf16.msra.mxu0 0
        %633 = vmatprep.subr.bf16.mxu0 0
        %634 = vmatpush1.bf16.msra.mxu0 0
        %635 = vmatprep.subr.bf16.mxu0 0
        %636 = vmatpush1.bf16.msra.mxu0 0
        %637 = vmatprep.subr.bf16.mxu0 0
        %638 = vmatpush1.bf16.msra.mxu0 0
        %639 = vmatprep.mubr.bf16.mxu0 0
        %640 = vmatmul.mubr.bf16.gmra.mrb[0].mxu0 %v592
        %v641 = vpop.f32.mrb[0].mxu0
        %v642 = vadd.f32 0.0, %v641
        %v643 = vpop.f32.mrb[0].mxu0
        %v644 = vpop.f32.mrb[0].mxu0
        %v645 = vadd.f32 0.0, %v644
        %v646 = vpop.f32.mrb[0].mxu0
        %647 = vmatprep.mubr.bf16.mxu0 0
        %648 = vmatmul.mubr.bf16.gmra.mrb[0].mxu0 %v595
        %v649 = vpop.f32.mrb[0].mxu0
        %v650 = vadd.f32 0.0, %v649
        %v651 = vpop.f32.mrb[0].mxu0
        %v652 = vpop.f32.mrb[0].mxu0
        %v653 = vadd.f32 0.0, %v652
        %v654 = vpop.f32.mrb[0].mxu0
        %655 = vmatprep.mubr.bf16.mxu0 0
        %656 = vmatmul.mubr.bf16.gmra.mrb[0].mxu0 %v598
        %v657 = vpop.f32.mrb[0].mxu0
        %v658 = vadd.f32 0.0, %v657
        %v659 = vpop.f32.mrb[0].mxu0
        %v660 = vpop.f32.mrb[0].mxu0
        %v661 = vadd.f32 0.0, %v660
        %v662 = vpop.f32.mrb[0].mxu0
        %663 = vmatprep.mubr.bf16.mxu0 0
        %664 = vmatmul.mubr.bf16.gmra.mrb[0].mxu0 %v601
        %v665 = vpop.f32.mrb[0].mxu0
        %v666 = vadd.f32 0.0, %v665
        %v667 = vpop.f32.mrb[0].mxu0
        %v668 = vpop.f32.mrb[0].mxu0
        %v669 = vadd.f32 0.0, %v668
        %v670 = vpop.f32.mrb[0].mxu0
        %671 = vdwg.mxu0
        %vm672 = vcmask 130048
        %v673 = vsel %vm672, %v642, -inf
        %674 = vmax.xlane.f32.xlu0 %v673
        %v675 = vpop.xlane.xlu0 %674
        %v676 = vsel %vm672, %v645, -inf
        %677 = vmax.xlane.f32.xlu0 %v676
        %v678 = vpop.xlane.xlu0 %677
        %v679 = vsel %vm672, %v650, -inf
        %680 = vmax.xlane.f32.xlu0 %v679
        %v681 = vpop.xlane.xlu0 %680
        %v682 = vsel %vm672, %v653, -inf
        %683 = vmax.xlane.f32.xlu0 %v682
        %v684 = vpop.xlane.xlu0 %683
        %v685 = vsel %vm672, %v658, -inf
        %686 = vmax.xlane.f32.xlu0 %v685
        %v687 = vpop.xlane.xlu0 %686
        %v688 = vsel %vm672, %v661, -inf
        %689 = vmax.xlane.f32.xlu0 %v688
        %v690 = vpop.xlane.xlu0 %689
        %v691 = vsel %vm672, %v666, -inf
        %692 = vmax.xlane.f32.xlu0 %v691
        %v693 = vpop.xlane.xlu0 %692
        %v694 = vsel %vm672, %v669, -inf
        %695 = vmax.xlane.f32.xlu0 %v694
        %v696 = vpop.xlane.xlu0 %695
        %v697 = vsub.f32 %v642, %v675
        %v698 = vsub.f32 %v645, %v678
        %v699 = vsub.f32 %v650, %v681
        %v700 = vsub.f32 %v653, %v684
        %v701 = vsub.f32 %v658, %v687
        %v702 = vsub.f32 %v661, %v690
        %v703 = vsub.f32 %v666, %v693
        %v704 = vsub.f32 %v669, %v696
        %v705 = vmul.f32 %v697, 1.442695
        %v706 = vpow.pop %v705
        %v707 = vmul.f32 %v698, 1.442695
        %v708 = vpow.pop %v707
        %v709 = vmul.f32 %v699, 1.442695
        %v710 = vpow.pop %v709
        %v711 = vmul.f32 %v700, 1.442695
        %v712 = vpow.pop %v711
        %v713 = vmul.f32 %v701, 1.442695
        %v714 = vpow.pop %v713
        %v715 = vmul.f32 %v702, 1.442695
        %v716 = vpow.pop %v715
        %v717 = vmul.f32 %v703, 1.442695
        %v718 = vpow.pop %v717
        %v719 = vmul.f32 %v704, 1.442695
        %v720 = vpow.pop %v719
        %v721 = vsel %vm672, %v706, 0.0
        %722 = vadd.xlane.f32.xlu0 %v721
        %v723 = vpop.xlane.xlu0 %722
        %v724 = vsel %vm672, %v708, 0.0
        %725 = vadd.xlane.f32.xlu0 %v724
        %v726 = vpop.xlane.xlu0 %725
        %v727 = vsel %vm672, %v710, 0.0
        %728 = vadd.xlane.f32.xlu0 %v727
        %v729 = vpop.xlane.xlu0 %728
        %v730 = vsel %vm672, %v712, 0.0
        %731 = vadd.xlane.f32.xlu0 %v730
        %v732 = vpop.xlane.xlu0 %731
        %v733 = vsel %vm672, %v714, 0.0
        %734 = vadd.xlane.f32.xlu0 %v733
        %v735 = vpop.xlane.xlu0 %734
        %v736 = vsel %vm672, %v716, 0.0
        %737 = vadd.xlane.f32.xlu0 %v736
        %v738 = vpop.xlane.xlu0 %737
        %v739 = vsel %vm672, %v718, 0.0
        %740 = vadd.xlane.f32.xlu0 %v739
        %v741 = vpop.xlane.xlu0 %740
        %v742 = vsel %vm672, %v720, 0.0
        %743 = vadd.xlane.f32.xlu0 %v742
        %v744 = vpop.xlane.xlu0 %743
        %v745 = vrcp.pop %v723
        %v746 = vrcp.pop %v726
        %v747 = vrcp.pop %v729
        %v748 = vrcp.pop %v732
        %v749 = vrcp.pop %v735
        %v750 = vrcp.pop %v738
        %v751 = vrcp.pop %v741
        %v752 = vrcp.pop %v744
        %v753 = vmul.f32 %v706, %v745
        %v754 = vmul.f32 %v708, %v746
        %v755 = vmul.f32 %v710, %v747
        %v756 = vmul.f32 %v712, %v748
        %v757 = vmul.f32 %v714, %v749
        %v758 = vmul.f32 %v716, %v750
        %v759 = vmul.f32 %v718, %v751
        %v760 = vmul.f32 %v720, %v752
        %v761 = vpack.c.bf16 %v754, %v753
        %v762 = vpack.c.bf16 %v756, %v755
        %v763 = vpack.c.bf16 %v758, %v757
        %v764 = vpack.c.bf16 %v760, %v759
        %v766 = vsel %vm672, %v761, 0
        %v769 = vsel %vm672, %v762, 0
        %v772 = vsel %vm672, %v763, 0
        %v775 = vsel %vm672, %v764, 0
        %v778 = vsel %vm672, %v589, 0
        %780 = vmatprep.subr.bf16.mxu0 0
        %781 = vmatpush1.bf16.xpose.msra.mxu0 %v778
        %782 = vmatprep.subr.bf16.mxu0 0
        %783 = vmatpush1.bf16.xpose.msra.mxu0 0
        %784 = vmatprep.subr.bf16.mxu0 0
        %785 = vmatpush1.bf16.xpose.msra.mxu0 0
        %786 = vmatprep.subr.bf16.mxu0 0
        %787 = vmatpush1.bf16.xpose.msra.mxu0 0
        %788 = vmatprep.subr.bf16.mxu0 0
        %789 = vmatpush1.bf16.xpose.msra.mxu0 0
        %790 = vmatprep.subr.bf16.mxu0 0
        %791 = vmatpush1.bf16.xpose.msra.mxu0 0
        %792 = vmatprep.subr.bf16.mxu0 0
        %793 = vmatpush1.bf16.xpose.msra.mxu0 0
        %794 = vmatprep.subr.bf16.mxu0 0
        %795 = vmatpush1.bf16.xpose.msra.mxu0 0
        %796 = vmatprep.subr.bf16.mxu0 0
        %797 = vmatpush1.bf16.xpose.msra.mxu0 0
        %798 = vmatprep.subr.bf16.mxu0 0
        %799 = vmatpush1.bf16.xpose.msra.mxu0 0
        %800 = vmatprep.subr.bf16.mxu0 0
        %801 = vmatpush1.bf16.xpose.msra.mxu0 0
        %802 = vmatprep.subr.bf16.mxu0 0
        %803 = vmatpush1.bf16.xpose.msra.mxu0 0
        %804 = vmatprep.subr.bf16.mxu0 0
        %805 = vmatpush1.bf16.xpose.msra.mxu0 0
        %806 = vmatprep.subr.bf16.mxu0 0
        %807 = vmatpush1.bf16.xpose.msra.mxu0 0
        %808 = vmatprep.subr.bf16.mxu0 0
        %809 = vmatpush1.bf16.xpose.msra.mxu0 0
        %810 = vmatprep.subr.bf16.mxu0 0
        %811 = vmatpush1.bf16.xpose.msra.mxu0 0
        %812 = vmatprep.mubr.bf16.mxu0 0
        %813 = vmatmul.mubr.bf16.gmra.mrb[0].mxu0 %v766
        %v814 = vpop.f32.mrb[0].mxu0
        %v815 = vadd.f32 0.0, %v814
        %v816 = vpop.f32.mrb[0].mxu0
        %v817 = vpop.f32.mrb[0].mxu0
        %v818 = vadd.f32 0.0, %v817
        %v819 = vpop.f32.mrb[0].mxu0
        %820 = vmatprep.mubr.bf16.mxu0 0
        %821 = vmatmul.mubr.bf16.gmra.mrb[0].mxu0 %v769
        %v822 = vpop.f32.mrb[0].mxu0
        %v823 = vadd.f32 0.0, %v822
        %v824 = vpop.f32.mrb[0].mxu0
        %v825 = vpop.f32.mrb[0].mxu0
        %v826 = vadd.f32 0.0, %v825
        %v827 = vpop.f32.mrb[0].mxu0
        %828 = vmatprep.mubr.bf16.mxu0 0
        %829 = vmatmul.mubr.bf16.gmra.mrb[0].mxu0 %v772
        %v830 = vpop.f32.mrb[0].mxu0
        %v831 = vadd.f32 0.0, %v830
        %v832 = vpop.f32.mrb[0].mxu0
        %v833 = vpop.f32.mrb[0].mxu0
        %v834 = vadd.f32 0.0, %v833
        %v835 = vpop.f32.mrb[0].mxu0
        %836 = vmatprep.mubr.bf16.mxu0 0
        %837 = vmatmul.mubr.bf16.gmra.mrb[0].mxu0 %v775
        %v838 = vpop.f32.mrb[0].mxu0
        %v839 = vadd.f32 0.0, %v838
        %v840 = vpop.f32.mrb[0].mxu0
        %v841 = vpop.f32.mrb[0].mxu0
        %v842 = vadd.f32 0.0, %v841
        %v843 = vpop.f32.mrb[0].mxu0
        %844 = vdwg.mxu0
        %s845 = sld [smem:[#allocation2 + $0x1]]
        %v846 = vstv %s845
        %v847 = vmul.f32 %v491, %v846
        %v848 = vpack.c.bf16 %v847, %v847
        %v849 = vpack.c.bf16 %v574, %v574
        %854 = vrot.lane.b32.xlu0 %v382, 120
        %v855 = vpop.permute.xlu0 %854
        %856 = vrot.lane.b32.xlu0 %v383, 120
        %v857 = vpop.permute.xlu0 %856
        %858 = vrot.lane.b32.xlu0 %v384, 120
        %v859 = vpop.permute.xlu0 %858
        %860 = vrot.lane.b32.xlu0 %v385, 120
        %v861 = vpop.permute.xlu0 %860
        %v863 = vsel %vm590, %v855, 0
        %v866 = vsel %vm590, %v857, 0
        %v869 = vsel %vm590, %v859, 0
        %v872 = vsel %vm590, %v861, 0
        %v875 = vsel %vm603, %v848, 0
        %877 = vmatprep.subr.bf16.mxu0 0
        %878 = vmatpush1.bf16.msra.mxu0 %v875
        %879 = vmatprep.subr.bf16.mxu0 0
        %880 = vmatpush1.bf16.msra.mxu0 0
        %881 = vmatprep.subr.bf16.mxu0 0
        %882 = vmatpush1.bf16.msra.mxu0 0
        %883 = vmatprep.subr.bf16.mxu0 0
        %884 = vmatpush1.bf16.msra.mxu0 0
        %885 = vmatprep.subr.bf16.mxu0 0
        %886 = vmatpush1.bf16.msra.mxu0 0
        %887 = vmatprep.subr.bf16.mxu0 0
        %888 = vmatpush1.bf16.msra.mxu0 0
        %889 = vmatprep.subr.bf16.mxu0 0
        %890 = vmatpush1.bf16.msra.mxu0 0
        %891 = vmatprep.subr.bf16.mxu0 0
        %892 = vmatpush1.bf16.msra.mxu0 0
        %893 = vmatprep.subr.bf16.mxu0 0
        %894 = vmatpush1.bf16.msra.mxu0 0
        %895 = vmatprep.subr.bf16.mxu0 0
        %896 = vmatpush1.bf16.msra.mxu0 0
        %897 = vmatprep.subr.bf16.mxu0 0
        %898 = vmatpush1.bf16.msra.mxu0 0
        %899 = vmatprep.subr.bf16.mxu0 0
        %900 = vmatpush1.bf16.msra.mxu0 0
        %901 = vmatprep.subr.bf16.mxu0 0
        %902 = vmatpush1.bf16.msra.mxu0 0
        %903 = vmatprep.subr.bf16.mxu0 0
        %904 = vmatpush1.bf16.msra.mxu0 0
        %905 = vmatprep.subr.bf16.mxu0 0
        %906 = vmatpush1.bf16.msra.mxu0 0
        %907 = vmatprep.subr.bf16.mxu0 0
        %908 = vmatpush1.bf16.msra.mxu0 0
        %909 = vmatprep.mubr.bf16.mxu0 0
        %910 = vmatmul.mubr.bf16.gmra.mrb[0].mxu0 %v863
        %v911 = vpop.f32.mrb[0].mxu0
        %v912 = vadd.f32 0.0, %v911
        %v913 = vpop.f32.mrb[0].mxu0
        %v914 = vpop.f32.mrb[0].mxu0
        %v915 = vadd.f32 0.0, %v914
        %v916 = vpop.f32.mrb[0].mxu0
        %917 = vmatprep.mubr.bf16.mxu0 0
        %918 = vmatmul.mubr.bf16.gmra.mrb[0].mxu0 %v866
        %v919 = vpop.f32.mrb[0].mxu0
        %v920 = vadd.f32 0.0, %v919
        %v921 = vpop.f32.mrb[0].mxu0
        %v922 = vpop.f32.mrb[0].mxu0
        %v923 = vadd.f32 0.0, %v922
        %v924 = vpop.f32.mrb[0].mxu0
        %925 = vmatprep.mubr.bf16.mxu0 0
        %926 = vmatmul.mubr.bf16.gmra.mrb[0].mxu0 %v869
        %v927 = vpop.f32.mrb[0].mxu0
        %v928 = vadd.f32 0.0, %v927
        %v929 = vpop.f32.mrb[0].mxu0
        %v930 = vpop.f32.mrb[0].mxu0
        %v931 = vadd.f32 0.0, %v930
        %v932 = vpop.f32.mrb[0].mxu0
        %933 = vmatprep.mubr.bf16.mxu0 0
        %934 = vmatmul.mubr.bf16.gmra.mrb[0].mxu0 %v872
        %v935 = vpop.f32.mrb[0].mxu0
        %v936 = vadd.f32 0.0, %v935
        %v937 = vpop.f32.mrb[0].mxu0
        %v938 = vpop.f32.mrb[0].mxu0
        %v939 = vadd.f32 0.0, %v938
        %v940 = vpop.f32.mrb[0].mxu0
        %941 = vdwg.mxu0
        %v942 = vsel %vm672, %v912, -inf
        %943 = vmax.xlane.f32.xlu0 %v942
        %v944 = vpop.xlane.xlu0 %943
        %v945 = vsel %vm672, %v915, -inf
        %946 = vmax.xlane.f32.xlu0 %v945
        %v947 = vpop.xlane.xlu0 %946
        %v948 = vsel %vm672, %v920, -inf
        %949 = vmax.xlane.f32.xlu0 %v948
        %v950 = vpop.xlane.xlu0 %949
        %v951 = vsel %vm672, %v923, -inf
        %952 = vmax.xlane.f32.xlu0 %v951
        %v953 = vpop.xlane.xlu0 %952
        %v954 = vsel %vm672, %v928, -inf
        %955 = vmax.xlane.f32.xlu0 %v954
        %v956 = vpop.xlane.xlu0 %955
        %v957 = vsel %vm672, %v931, -inf
        %958 = vmax.xlane.f32.xlu0 %v957
        %v959 = vpop.xlane.xlu0 %958
        %v960 = vsel %vm672, %v936, -inf
        %961 = vmax.xlane.f32.xlu0 %v960
        %v962 = vpop.xlane.xlu0 %961
        %v963 = vsel %vm672, %v939, -inf
        %964 = vmax.xlane.f32.xlu0 %v963
        %v965 = vpop.xlane.xlu0 %964
        %v966 = vsub.f32 %v912, %v944
        %v967 = vsub.f32 %v915, %v947
        %v968 = vsub.f32 %v920, %v950
        %v969 = vsub.f32 %v923, %v953
        %v970 = vsub.f32 %v928, %v956
        %v971 = vsub.f32 %v931, %v959
        %v972 = vsub.f32 %v936, %v962
        %v973 = vsub.f32 %v939, %v965
        %v974 = vmul.f32 %v966, 1.442695
        %v975 = vpow.pop %v974
        %v976 = vmul.f32 %v967, 1.442695
        %v977 = vpow.pop %v976
        %v978 = vmul.f32 %v968, 1.442695
        %v979 = vpow.pop %v978
        %v980 = vmul.f32 %v969, 1.442695
        %v981 = vpow.pop %v980
        %v982 = vmul.f32 %v970, 1.442695
        %v983 = vpow.pop %v982
        %v984 = vmul.f32 %v971, 1.442695
        %v985 = vpow.pop %v984
        %v986 = vmul.f32 %v972, 1.442695
        %v987 = vpow.pop %v986
        %v988 = vmul.f32 %v973, 1.442695
        %v989 = vpow.pop %v988
        %v990 = vsel %vm672, %v975, 0.0
        %991 = vadd.xlane.f32.xlu0 %v990
        %v992 = vpop.xlane.xlu0 %991
        %v993 = vsel %vm672, %v977, 0.0
        %994 = vadd.xlane.f32.xlu0 %v993
        %v995 = vpop.xlane.xlu0 %994
        %v996 = vsel %vm672, %v979, 0.0
        %997 = vadd.xlane.f32.xlu0 %v996
        %v998 = vpop.xlane.xlu0 %997
        %v999 = vsel %vm672, %v981, 0.0
        %1000 = vadd.xlane.f32.xlu0 %v999
        %v1001 = vpop.xlane.xlu0 %1000
        %v1002 = vsel %vm672, %v983, 0.0
        %1003 = vadd.xlane.f32.xlu0 %v1002
        %v1004 = vpop.xlane.xlu0 %1003
        %v1005 = vsel %vm672, %v985, 0.0
        %1006 = vadd.xlane.f32.xlu0 %v1005
        %v1007 = vpop.xlane.xlu0 %1006
        %v1008 = vsel %vm672, %v987, 0.0
        %1009 = vadd.xlane.f32.xlu0 %v1008
        %v1010 = vpop.xlane.xlu0 %1009
        %v1011 = vsel %vm672, %v989, 0.0
        %1012 = vadd.xlane.f32.xlu0 %v1011
        %v1013 = vpop.xlane.xlu0 %1012
        %v1014 = vrcp.pop %v992
        %v1015 = vrcp.pop %v995
        %v1016 = vrcp.pop %v998
        %v1017 = vrcp.pop %v1001
        %v1018 = vrcp.pop %v1004
        %v1019 = vrcp.pop %v1007
        %v1020 = vrcp.pop %v1010
        %v1021 = vrcp.pop %v1013
        %v1022 = vmul.f32 %v975, %v1014
        %v1023 = vmul.f32 %v977, %v1015
        %v1024 = vmul.f32 %v979, %v1016
        %v1025 = vmul.f32 %v981, %v1017
        %v1026 = vmul.f32 %v983, %v1018
        %v1027 = vmul.f32 %v985, %v1019
        %v1028 = vmul.f32 %v987, %v1020
        %v1029 = vmul.f32 %v989, %v1021
        %v1030 = vpack.c.bf16 %v1023, %v1022
        %v1031 = vpack.c.bf16 %v1025, %v1024
        %v1032 = vpack.c.bf16 %v1027, %v1026
        %v1033 = vpack.c.bf16 %v1029, %v1028
        %v1035 = vsel %vm672, %v1030, 0
        %v1038 = vsel %vm672, %v1031, 0
        %v1041 = vsel %vm672, %v1032, 0
        %v1044 = vsel %vm672, %v1033, 0
        %v1047 = vsel %vm672, %v849, 0
        %1049 = vmatprep.subr.bf16.mxu0 0
        %1050 = vmatpush1.bf16.xpose.msra.mxu0 %v1047
        %1051 = vmatprep.subr.bf16.mxu0 0
        %1052 = vmatpush1.bf16.xpose.msra.mxu0 0
        %1053 = vmatprep.subr.bf16.mxu0 0
        %1054 = vmatpush1.bf16.xpose.msra.mxu0 0
        %1055 = vmatprep.subr.bf16.mxu0 0
        %1056 = vmatpush1.bf16.xpose.msra.mxu0 0
        %1057 = vmatprep.subr.bf16.mxu0 0
        %1058 = vmatpush1.bf16.xpose.msra.mxu0 0
        %1059 = vmatprep.subr.bf16.mxu0 0
        %1060 = vmatpush1.bf16.xpose.msra.mxu0 0
        %1061 = vmatprep.subr.bf16.mxu0 0
        %1062 = vmatpush1.bf16.xpose.msra.mxu0 0
        %1063 = vmatprep.subr.bf16.mxu0 0
        %1064 = vmatpush1.bf16.xpose.msra.mxu0 0
        %1065 = vmatprep.subr.bf16.mxu0 0
        %1066 = vmatpush1.bf16.xpose.msra.mxu0 0
        %1067 = vmatprep.subr.bf16.mxu0 0
        %1068 = vmatpush1.bf16.xpose.msra.mxu0 0
        %1069 = vmatprep.subr.bf16.mxu0 0
        %1070 = vmatpush1.bf16.xpose.msra.mxu0 0
        %1071 = vmatprep.subr.bf16.mxu0 0
        %1072 = vmatpush1.bf16.xpose.msra.mxu0 0
        %1073 = vmatprep.subr.bf16.mxu0 0
        %1074 = vmatpush1.bf16.xpose.msra.mxu0 0
        %1075 = vmatprep.subr.bf16.mxu0 0
        %1076 = vmatpush1.bf16.xpose.msra.mxu0 0
        %1077 = vmatprep.subr.bf16.mxu0 0
        %1078 = vmatpush1.bf16.xpose.msra.mxu0 0
        %1079 = vmatprep.subr.bf16.mxu0 0
        %1080 = vmatpush1.bf16.xpose.msra.mxu0 0
        %1081 = vmatprep.mubr.bf16.mxu0 0
        %1082 = vmatmul.mubr.bf16.gmra.mrb[0].mxu0 %v1035
        %v1083 = vpop.f32.mrb[0].mxu0
        %v1084 = vadd.f32 0.0, %v1083
        %v1085 = vpop.f32.mrb[0].mxu0
        %v1086 = vpop.f32.mrb[0].mxu0
        %v1087 = vadd.f32 0.0, %v1086
        %v1088 = vpop.f32.mrb[0].mxu0
        %1089 = vmatprep.mubr.bf16.mxu0 0
        %1090 = vmatmul.mubr.bf16.gmra.mrb[0].mxu0 %v1038
        %v1091 = vpop.f32.mrb[0].mxu0
        %v1092 = vadd.f32 0.0, %v1091
        %v1093 = vpop.f32.mrb[0].mxu0
        %v1094 = vpop.f32.mrb[0].mxu0
        %v1095 = vadd.f32 0.0, %v1094
        %v1096 = vpop.f32.mrb[0].mxu0
        %1097 = vmatprep.mubr.bf16.mxu0 0
        %1098 = vmatmul.mubr.bf16.gmra.mrb[0].mxu0 %v1041
        %v1099 = vpop.f32.mrb[0].mxu0
        %v1100 = vadd.f32 0.0, %v1099
        %v1101 = vpop.f32.mrb[0].mxu0
        %v1102 = vpop.f32.mrb[0].mxu0
        %v1103 = vadd.f32 0.0, %v1102
        %v1104 = vpop.f32.mrb[0].mxu0
        %1105 = vmatprep.mubr.bf16.mxu0 0
        %1106 = vmatmul.mubr.bf16.gmra.mrb[0].mxu0 %v1044
        %v1107 = vpop.f32.mrb[0].mxu0
        %v1108 = vadd.f32 0.0, %v1107
        %v1109 = vpop.f32.mrb[0].mxu0
        %v1110 = vpop.f32.mrb[0].mxu0
        %v1111 = vadd.f32 0.0, %v1110
        %v1112 = vpop.f32.mrb[0].mxu0
        %1113 = vdwg.mxu0
        %s1114 = sld [smem:[#allocation2 + $0x2]]
        %v1115 = vstv %s1114
        %v1116 = vmul.f32 %v496, %v1115
        %v1117 = vpack.c.bf16 %v1116, %v1116
        %v1118 = vpack.c.bf16 %v579, %v579
        %1119 = vrot.lane.b32.xlu0 %v382, 112
        %v1120 = vpop.permute.xlu0 %1119
        %1121 = vrot.lane.b32.xlu0 %v383, 112
        %v1122 = vpop.permute.xlu0 %1121
        %1123 = vrot.lane.b32.xlu0 %v384, 112
        %v1124 = vpop.permute.xlu0 %1123
        %1125 = vrot.lane.b32.xlu0 %v385, 112
        %v1126 = vpop.permute.xlu0 %1125
        %v1128 = vsel %vm590, %v1120, 0
        %v1131 = vsel %vm590, %v1122, 0
        %v1134 = vsel %vm590, %v1124, 0
        %v1137 = vsel %vm590, %v1126, 0
        %v1140 = vsel %vm603, %v1117, 0
        %1142 = vmatprep.subr.bf16.mxu0 0
        %1143 = vmatpush1.bf16.msra.mxu0 %v1140
        %1144 = vmatprep.subr.bf16.mxu0 0
        %1145 = vmatpush1.bf16.msra.mxu0 0
        %1146 = vmatprep.subr.bf16.mxu0 0
        %1147 = vmatpush1.bf16.msra.mxu0 0
        %1148 = vmatprep.subr.bf16.mxu0 0
        %1149 = vmatpush1.bf16.msra.mxu0 0
        %1150 = vmatprep.subr.bf16.mxu0 0
        %1151 = vmatpush1.bf16.msra.mxu0 0
        %1152 = vmatprep.subr.bf16.mxu0 0
        %1153 = vmatpush1.bf16.msra.mxu0 0
        %1154 = vmatprep.subr.bf16.mxu0 0
        %1155 = vmatpush1.bf16.msra.mxu0 0
        %1156 = vmatprep.subr.bf16.mxu0 0
        %1157 = vmatpush1.bf16.msra.mxu0 0
        %1158 = vmatprep.subr.bf16.mxu0 0
        %1159 = vmatpush1.bf16.msra.mxu0 0
        %1160 = vmatprep.subr.bf16.mxu0 0
        %1161 = vmatpush1.bf16.msra.mxu0 0
        %1162 = vmatprep.subr.bf16.mxu0 0
        %1163 = vmatpush1.bf16.msra.mxu0 0
        %1164 = vmatprep.subr.bf16.mxu0 0
        %1165 = vmatpush1.bf16.msra.mxu0 0
        %1166 = vmatprep.subr.bf16.mxu0 0
        %1167 = vmatpush1.bf16.msra.mxu0 0
        %1168 = vmatprep.subr.bf16.mxu0 0
        %1169 = vmatpush1.bf16.msra.mxu0 0
        %1170 = vmatprep.subr.bf16.mxu0 0
        %1171 = vmatpush1.bf16.msra.mxu0 0
        %1172 = vmatprep.subr.bf16.mxu0 0
        %1173 = vmatpush1.bf16.msra.mxu0 0
        %1174 = vmatprep.mubr.bf16.mxu0 0
        %1175 = vmatmul.mubr.bf16.gmra.mrb[0].mxu0 %v1128
        %v1176 = vpop.f32.mrb[0].mxu0
        %v1177 = vadd.f32 0.0, %v1176
        %v1178 = vpop.f32.mrb[0].mxu0
        %v1179 = vpop.f32.mrb[0].mxu0
        %v1180 = vadd.f32 0.0, %v1179
        %v1181 = vpop.f32.mrb[0].mxu0
        %1182 = vmatprep.mubr.bf16.mxu0 0
        %1183 = vmatmul.mubr.bf16.gmra.mrb[0].mxu0 %v1131
        %v1184 = vpop.f32.mrb[0].mxu0
        %v1185 = vadd.f32 0.0, %v1184
        %v1186 = vpop.f32.mrb[0].mxu0
        %v1187 = vpop.f32.mrb[0].mxu0
        %v1188 = vadd.f32 0.0, %v1187
        %v1189 = vpop.f32.mrb[0].mxu0
        %1190 = vmatprep.mubr.bf16.mxu0 0
        %1191 = vmatmul.mubr.bf16.gmra.mrb[0].mxu0 %v1134
        %v1192 = vpop.f32.mrb[0].mxu0
        %v1193 = vadd.f32 0.0, %v1192
        %v1194 = vpop.f32.mrb[0].mxu0
        %v1195 = vpop.f32.mrb[0].mxu0
        %v1196 = vadd.f32 0.0, %v1195
        %v1197 = vpop.f32.mrb[0].mxu0
        %1198 = vmatprep.mubr.bf16.mxu0 0
        %1199 = vmatmul.mubr.bf16.gmra.mrb[0].mxu0 %v1137
        %v1200 = vpop.f32.mrb[0].mxu0
        %v1201 = vadd.f32 0.0, %v1200
        %v1202 = vpop.f32.mrb[0].mxu0
        %v1203 = vpop.f32.mrb[0].mxu0
        %v1204 = vadd.f32 0.0, %v1203
        %v1205 = vpop.f32.mrb[0].mxu0
        %1206 = vdwg.mxu0
        %v1207 = vsel %vm672, %v1177, -inf
        %1208 = vmax.xlane.f32.xlu0 %v1207
        %v1209 = vpop.xlane.xlu0 %1208
        %v1210 = vsel %vm672, %v1180, -inf
        %1211 = vmax.xlane.f32.xlu0 %v1210
        %v1212 = vpop.xlane.xlu0 %1211
        %v1213 = vsel %vm672, %v1185, -inf
        %1214 = vmax.xlane.f32.xlu0 %v1213
        %v1215 = vpop.xlane.xlu0 %1214
        %v1216 = vsel %vm672, %v1188, -inf
        %1217 = vmax.xlane.f32.xlu0 %v1216
        %v1218 = vpop.xlane.xlu0 %1217
        %v1219 = vsel %vm672, %v1193, -inf
        %1220 = vmax.xlane.f32.xlu0 %v1219
        %v1221 = vpop.xlane.xlu0 %1220
        %v1222 = vsel %vm672, %v1196, -inf
        %1223 = vmax.xlane.f32.xlu0 %v1222
        %v1224 = vpop.xlane.xlu0 %1223
        %v1225 = vsel %vm672, %v1201, -inf
        %1226 = vmax.xlane.f32.xlu0 %v1225
        %v1227 = vpop.xlane.xlu0 %1226
        %v1228 = vsel %vm672, %v1204, -inf
        %1229 = vmax.xlane.f32.xlu0 %v1228
        %v1230 = vpop.xlane.xlu0 %1229
        %v1231 = vsub.f32 %v1177, %v1209
        %v1232 = vsub.f32 %v1180, %v1212
        %v1233 = vsub.f32 %v1185, %v1215
        %v1234 = vsub.f32 %v1188, %v1218
        %v1235 = vsub.f32 %v1193, %v1221
        %v1236 = vsub.f32 %v1196, %v1224
        %v1237 = vsub.f32 %v1201, %v1227
        %v1238 = vsub.f32 %v1204, %v1230
        %v1239 = vmul.f32 %v1231, 1.442695
        %v1240 = vpow.pop %v1239
        %v1241 = vmul.f32 %v1232, 1.442695
        %v1242 = vpow.pop %v1241
        %v1243 = vmul.f32 %v1233, 1.442695
        %v1244 = vpow.pop %v1243
        %v1245 = vmul.f32 %v1234, 1.442695
        %v1246 = vpow.pop %v1245
        %v1247 = vmul.f32 %v1235, 1.442695
        %v1248 = vpow.pop %v1247
        %v1249 = vmul.f32 %v1236, 1.442695
        %v1250 = vpow.pop %v1249
        %v1251 = vmul.f32 %v1237, 1.442695
        %v1252 = vpow.pop %v1251
        %v1253 = vmul.f32 %v1238, 1.442695
        %v1254 = vpow.pop %v1253
        %v1255 = vsel %vm672, %v1240, 0.0
        %1256 = vadd.xlane.f32.xlu0 %v1255
        %v1257 = vpop.xlane.xlu0 %1256
        %v1258 = vsel %vm672, %v1242, 0.0
        %1259 = vadd.xlane.f32.xlu0 %v1258
        %v1260 = vpop.xlane.xlu0 %1259
        %v1261 = vsel %vm672, %v1244, 0.0
        %1262 = vadd.xlane.f32.xlu0 %v1261
        %v1263 = vpop.xlane.xlu0 %1262
        %v1264 = vsel %vm672, %v1246, 0.0
        %1265 = vadd.xlane.f32.xlu0 %v1264
        %v1266 = vpop.xlane.xlu0 %1265
        %v1267 = vsel %vm672, %v1248, 0.0
        %1268 = vadd.xlane.f32.xlu0 %v1267
        %v1269 = vpop.xlane.xlu0 %1268
        %v1270 = vsel %vm672, %v1250, 0.0
        %1271 = vadd.xlane.f32.xlu0 %v1270
        %v1272 = vpop.xlane.xlu0 %1271
        %v1273 = vsel %vm672, %v1252, 0.0
        %1274 = vadd.xlane.f32.xlu0 %v1273
        %v1275 = vpop.xlane.xlu0 %1274
        %v1276 = vsel %vm672, %v1254, 0.0
        %1277 = vadd.xlane.f32.xlu0 %v1276
        %v1278 = vpop.xlane.xlu0 %1277
        %v1279 = vrcp.pop %v1257
        %v1280 = vrcp.pop %v1260
        %v1281 = vrcp.pop %v1263
        %v1282 = vrcp.pop %v1266
        %v1283 = vrcp.pop %v1269
        %v1284 = vrcp.pop %v1272
        %v1285 = vrcp.pop %v1275
        %v1286 = vrcp.pop %v1278
        %v1287 = vmul.f32 %v1240, %v1279
        %v1288 = vmul.f32 %v1242, %v1280
        %v1289 = vmul.f32 %v1244, %v1281
        %v1290 = vmul.f32 %v1246, %v1282
        %v1291 = vmul.f32 %v1248, %v1283
        %v1292 = vmul.f32 %v1250, %v1284
        %v1293 = vmul.f32 %v1252, %v1285
        %v1294 = vmul.f32 %v1254, %v1286
        %v1295 = vpack.c.bf16 %v1288, %v1287
        %v1296 = vpack.c.bf16 %v1290, %v1289
        %v1297 = vpack.c.bf16 %v1292, %v1291
        %v1298 = vpack.c.bf16 %v1294, %v1293
        %v1300 = vsel %vm672, %v1295, 0
        %v1303 = vsel %vm672, %v1296, 0
        %v1306 = vsel %vm672, %v1297, 0
        %v1309 = vsel %vm672, %v1298, 0
        %v1312 = vsel %vm672, %v1118, 0
        %1314 = vmatprep.subr.bf16.mxu0 0
        %1315 = vmatpush1.bf16.xpose.msra.mxu0 %v1312
        %1316 = vmatprep.subr.bf16.mxu0 0
        %1317 = vmatpush1.bf16.xpose.msra.mxu0 0
        %1318 = vmatprep.subr.bf16.mxu0 0
        %1319 = vmatpush1.bf16.xpose.msra.mxu0 0
        %1320 = vmatprep.subr.bf16.mxu0 0
        %1321 = vmatpush1.bf16.xpose.msra.mxu0 0
        %1322 = vmatprep.subr.bf16.mxu0 0
        %1323 = vmatpush1.bf16.xpose.msra.mxu0 0
        %1324 = vmatprep.subr.bf16.mxu0 0
        %1325 = vmatpush1.bf16.xpose.msra.mxu0 0
        %1326 = vmatprep.subr.bf16.mxu0 0
        %1327 = vmatpush1.bf16.xpose.msra.mxu0 0
        %1328 = vmatprep.subr.bf16.mxu0 0
        %1329 = vmatpush1.bf16.xpose.msra.mxu0 0
        %1330 = vmatprep.subr.bf16.mxu0 0
        %1331 = vmatpush1.bf16.xpose.msra.mxu0 0
        %1332 = vmatprep.subr.bf16.mxu0 0
        %1333 = vmatpush1.bf16.xpose.msra.mxu0 0
        %1334 = vmatprep.subr.bf16.mxu0 0
        %1335 = vmatpush1.bf16.xpose.msra.mxu0 0
        %1336 = vmatprep.subr.bf16.mxu0 0
        %1337 = vmatpush1.bf16.xpose.msra.mxu0 0
        %1338 = vmatprep.subr.bf16.mxu0 0
        %1339 = vmatpush1.bf16.xpose.msra.mxu0 0
        %1340 = vmatprep.subr.bf16.mxu0 0
        %1341 = vmatpush1.bf16.xpose.msra.mxu0 0
        %1342 = vmatprep.subr.bf16.mxu0 0
        %1343 = vmatpush1.bf16.xpose.msra.mxu0 0
        %1344 = vmatprep.subr.bf16.mxu0 0
        %1345 = vmatpush1.bf16.xpose.msra.mxu0 0
        %1346 = vmatprep.mubr.bf16.mxu0 0
        %1347 = vmatmul.mubr.bf16.gmra.mrb[0].mxu0 %v1300
        %v1348 = vpop.f32.mrb[0].mxu0
        %v1349 = vadd.f32 0.0, %v1348
        %v1350 = vpop.f32.mrb[0].mxu0
        %v1351 = vpop.f32.mrb[0].mxu0
        %v1352 = vadd.f32 0.0, %v1351
        %v1353 = vpop.f32.mrb[0].mxu0
        %1354 = vmatprep.mubr.bf16.mxu0 0
        %1355 = vmatmul.mubr.bf16.gmra.mrb[0].mxu0 %v1303
        %v1356 = vpop.f32.mrb[0].mxu0
        %v1357 = vadd.f32 0.0, %v1356
        %v1358 = vpop.f32.mrb[0].mxu0
        %v1359 = vpop.f32.mrb[0].mxu0
        %v1360 = vadd.f32 0.0, %v1359
        %v1361 = vpop.f32.mrb[0].mxu0
        %1362 = vmatprep.mubr.bf16.mxu0 0
        %1363 = vmatmul.mubr.bf16.gmra.mrb[0].mxu0 %v1306
        %v1364 = vpop.f32.mrb[0].mxu0
        %v1365 = vadd.f32 0.0, %v1364
        %v1366 = vpop.f32.mrb[0].mxu0
        %v1367 = vpop.f32.mrb[0].mxu0
        %v1368 = vadd.f32 0.0, %v1367
        %v1369 = vpop.f32.mrb[0].mxu0
        %1370 = vmatprep.mubr.bf16.mxu0 0
        %1371 = vmatmul.mubr.bf16.gmra.mrb[0].mxu0 %v1309
        %v1372 = vpop.f32.mrb[0].mxu0
        %v1373 = vadd.f32 0.0, %v1372
        %v1374 = vpop.f32.mrb[0].mxu0
        %v1375 = vpop.f32.mrb[0].mxu0
        %v1376 = vadd.f32 0.0, %v1375
        %v1377 = vpop.f32.mrb[0].mxu0
        %1378 = vdwg.mxu0
        %s1379 = sld [smem:[#allocation2 + $0x3]]
        %v1380 = vstv %s1379
        %v1381 = vmul.f32 %v499, %v1380
        %v1382 = vpack.c.bf16 %v1381, %v1381
        %v1383 = vpack.c.bf16 %v582, %v582
        %1384 = vrot.lane.b32.xlu0 %v382, 104
        %v1385 = vpop.permute.xlu0 %1384
        %1386 = vrot.lane.b32.xlu0 %v383, 104
        %v1387 = vpop.permute.xlu0 %1386
        %1388 = vrot.lane.b32.xlu0 %v384, 104
        %v1389 = vpop.permute.xlu0 %1388
        %1390 = vrot.lane.b32.xlu0 %v385, 104
        %v1391 = vpop.permute.xlu0 %1390
        %v1393 = vsel %vm590, %v1385, 0
        %v1396 = vsel %vm590, %v1387, 0
        %v1399 = vsel %vm590, %v1389, 0
        %v1402 = vsel %vm590, %v1391, 0
        %v1405 = vsel %vm603, %v1382, 0
        %1407 = vmatprep.subr.bf16.mxu0 0
        %1408 = vmatpush1.bf16.msra.mxu0 %v1405
        %1409 = vmatprep.subr.bf16.mxu0 0
        %1410 = vmatpush1.bf16.msra.mxu0 0
        %1411 = vmatprep.subr.bf16.mxu0 0
        %1412 = vmatpush1.bf16.msra.mxu0 0
        %1413 = vmatprep.subr.bf16.mxu0 0
        %1414 = vmatpush1.bf16.msra.mxu0 0
        %1415 = vmatprep.subr.bf16.mxu0 0
        %1416 = vmatpush1.bf16.msra.mxu0 0
        %1417 = vmatprep.subr.bf16.mxu0 0
        %1418 = vmatpush1.bf16.msra.mxu0 0
        %1419 = vmatprep.subr.bf16.mxu0 0
        %1420 = vmatpush1.bf16.msra.mxu0 0
        %1421 = vmatprep.subr.bf16.mxu0 0
        %1422 = vmatpush1.bf16.msra.mxu0 0
        %1423 = vmatprep.subr.bf16.mxu0 0
        %1424 = vmatpush1.bf16.msra.mxu0 0
        %1425 = vmatprep.subr.bf16.mxu0 0
        %1426 = vmatpush1.bf16.msra.mxu0 0
        %1427 = vmatprep.subr.bf16.mxu0 0
        %1428 = vmatpush1.bf16.msra.mxu0 0
        %1429 = vmatprep.subr.bf16.mxu0 0
        %1430 = vmatpush1.bf16.msra.mxu0 0
        %1431 = vmatprep.subr.bf16.mxu0 0
        %1432 = vmatpush1.bf16.msra.mxu0 0
        %1433 = vmatprep.subr.bf16.mxu0 0
        %1434 = vmatpush1.bf16.msra.mxu0 0
        %1435 = vmatprep.subr.bf16.mxu0 0
        %1436 = vmatpush1.bf16.msra.mxu0 0
        %1437 = vmatprep.subr.bf16.mxu0 0
        %1438 = vmatpush1.bf16.msra.mxu0 0
        %1439 = vmatprep.mubr.bf16.mxu0 0
        %1440 = vmatmul.mubr.bf16.gmra.mrb[0].mxu0 %v1393
        %v1441 = vpop.f32.mrb[0].mxu0
        %v1442 = vadd.f32 0.0, %v1441
        %v1443 = vpop.f32.mrb[0].mxu0
        %v1444 = vpop.f32.mrb[0].mxu0
        %v1445 = vadd.f32 0.0, %v1444
        %v1446 = vpop.f32.mrb[0].mxu0
        %1447 = vmatprep.mubr.bf16.mxu0 0
        %1448 = vmatmul.mubr.bf16.gmra.mrb[0].mxu0 %v1396
        %v1449 = vpop.f32.mrb[0].mxu0
        %v1450 = vadd.f32 0.0, %v1449
        %v1451 = vpop.f32.mrb[0].mxu0
        %v1452 = vpop.f32.mrb[0].mxu0
        %v1453 = vadd.f32 0.0, %v1452
        %v1454 = vpop.f32.mrb[0].mxu0
        %1455 = vmatprep.mubr.bf16.mxu0 0
        %1456 = vmatmul.mubr.bf16.gmra.mrb[0].mxu0 %v1399
        %v1457 = vpop.f32.mrb[0].mxu0
        %v1458 = vadd.f32 0.0, %v1457
        %v1459 = vpop.f32.mrb[0].mxu0
        %v1460 = vpop.f32.mrb[0].mxu0
        %v1461 = vadd.f32 0.0, %v1460
        %v1462 = vpop.f32.mrb[0].mxu0
        %1463 = vmatprep.mubr.bf16.mxu0 0
        %1464 = vmatmul.mubr.bf16.gmra.mrb[0].mxu0 %v1402
        %v1465 = vpop.f32.mrb[0].mxu0
        %v1466 = vadd.f32 0.0, %v1465
        %v1467 = vpop.f32.mrb[0].mxu0
        %v1468 = vpop.f32.mrb[0].mxu0
        %v1469 = vadd.f32 0.0, %v1468
        %v1470 = vpop.f32.mrb[0].mxu0
        %1471 = vdwg.mxu0
        %v1472 = vsel %vm672, %v1442, -inf
        %1473 = vmax.xlane.f32.xlu0 %v1472
        %v1474 = vpop.xlane.xlu0 %1473
        %v1475 = vsel %vm672, %v1445, -inf
        %1476 = vmax.xlane.f32.xlu0 %v1475
        %v1477 = vpop.xlane.xlu0 %1476
        %v1478 = vsel %vm672, %v1450, -inf
        %1479 = vmax.xlane.f32.xlu0 %v1478
        %v1480 = vpop.xlane.xlu0 %1479
        %v1481 = vsel %vm672, %v1453, -inf
        %1482 = vmax.xlane.f32.xlu0 %v1481
        %v1483 = vpop.xlane.xlu0 %1482
        %v1484 = vsel %vm672, %v1458, -inf
        %1485 = vmax.xlane.f32.xlu0 %v1484
        %v1486 = vpop.xlane.xlu0 %1485
        %v1487 = vsel %vm672, %v1461, -inf
        %1488 = vmax.xlane.f32.xlu0 %v1487
        %v1489 = vpop.xlane.xlu0 %1488
        %v1490 = vsel %vm672, %v1466, -inf
        %1491 = vmax.xlane.f32.xlu0 %v1490
        %v1492 = vpop.xlane.xlu0 %1491
        %v1493 = vsel %vm672, %v1469, -inf
        %1494 = vmax.xlane.f32.xlu0 %v1493
        %v1495 = vpop.xlane.xlu0 %1494
        %v1496 = vsub.f32 %v1442, %v1474
        %v1497 = vsub.f32 %v1445, %v1477
        %v1498 = vsub.f32 %v1450, %v1480
        %v1499 = vsub.f32 %v1453, %v1483
        %v1500 = vsub.f32 %v1458, %v1486
        %v1501 = vsub.f32 %v1461, %v1489
        %v1502 = vsub.f32 %v1466, %v1492
        %v1503 = vsub.f32 %v1469, %v1495
        %v1504 = vmul.f32 %v1496, 1.442695
        %v1505 = vpow.pop %v1504
        %v1506 = vmul.f32 %v1497, 1.442695
        %v1507 = vpow.pop %v1506
        %v1508 = vmul.f32 %v1498, 1.442695
        %v1509 = vpow.pop %v1508
        %v1510 = vmul.f32 %v1499, 1.442695
        %v1511 = vpow.pop %v1510
        %v1512 = vmul.f32 %v1500, 1.442695
        %v1513 = vpow.pop %v1512
        %v1514 = vmul.f32 %v1501, 1.442695
        %v1515 = vpow.pop %v1514
        %v1516 = vmul.f32 %v1502, 1.442695
        %v1517 = vpow.pop %v1516
        %v1518 = vmul.f32 %v1503, 1.442695
        %v1519 = vpow.pop %v1518
        %v1520 = vsel %vm672, %v1505, 0.0
        %1521 = vadd.xlane.f32.xlu0 %v1520
        %v1522 = vpop.xlane.xlu0 %1521
        %v1523 = vsel %vm672, %v1507, 0.0
        %1524 = vadd.xlane.f32.xlu0 %v1523
        %v1525 = vpop.xlane.xlu0 %1524
        %v1526 = vsel %vm672, %v1509, 0.0
        %1527 = vadd.xlane.f32.xlu0 %v1526
        %v1528 = vpop.xlane.xlu0 %1527
        %v1529 = vsel %vm672, %v1511, 0.0
        %1530 = vadd.xlane.f32.xlu0 %v1529
        %v1531 = vpop.xlane.xlu0 %1530
        %v1532 = vsel %vm672, %v1513, 0.0
        %1533 = vadd.xlane.f32.xlu0 %v1532
        %v1534 = vpop.xlane.xlu0 %1533
        %v1535 = vsel %vm672, %v1515, 0.0
        %1536 = vadd.xlane.f32.xlu0 %v1535
        %v1537 = vpop.xlane.xlu0 %1536
        %v1538 = vsel %vm672, %v1517, 0.0
        %1539 = vadd.xlane.f32.xlu0 %v1538
        %v1540 = vpop.xlane.xlu0 %1539
        %v1541 = vsel %vm672, %v1519, 0.0
        %1542 = vadd.xlane.f32.xlu0 %v1541
        %v1543 = vpop.xlane.xlu0 %1542
        %v1544 = vrcp.pop %v1522
        %v1545 = vrcp.pop %v1525
        %v1546 = vrcp.pop %v1528
        %v1547 = vrcp.pop %v1531
        %v1548 = vrcp.pop %v1534
        %v1549 = vrcp.pop %v1537
        %v1550 = vrcp.pop %v1540
        %v1551 = vrcp.pop %v1543
        %v1552 = vmul.f32 %v1505, %v1544
        %v1553 = vmul.f32 %v1507, %v1545
        %v1554 = vmul.f32 %v1509, %v1546
        %v1555 = vmul.f32 %v1511, %v1547
        %v1556 = vmul.f32 %v1513, %v1548
        %v1557 = vmul.f32 %v1515, %v1549
        %v1558 = vmul.f32 %v1517, %v1550
        %v1559 = vmul.f32 %v1519, %v1551
        %v1560 = vpack.c.bf16 %v1553, %v1552
        %v1561 = vpack.c.bf16 %v1555, %v1554
        %v1562 = vpack.c.bf16 %v1557, %v1556
        %v1563 = vpack.c.bf16 %v1559, %v1558
        %v1565 = vsel %vm672, %v1560, 0
        %v1568 = vsel %vm672, %v1561, 0
        %v1571 = vsel %vm672, %v1562, 0
        %v1574 = vsel %vm672, %v1563, 0
        %v1577 = vsel %vm672, %v1383, 0
        %1579 = vmatprep.subr.bf16.mxu0 0
        %1580 = vmatpush1.bf16.xpose.msra.mxu0 %v1577
        %1581 = vmatprep.subr.bf16.mxu0 0
        %1582 = vmatpush1.bf16.xpose.msra.mxu0 0
        %1583 = vmatprep.subr.bf16.mxu0 0
        %1584 = vmatpush1.bf16.xpose.msra.mxu0 0
        %1585 = vmatprep.subr.bf16.mxu0 0
        %1586 = vmatpush1.bf16.xpose.msra.mxu0 0
        %1587 = vmatprep.subr.bf16.mxu0 0
        %1588 = vmatpush1.bf16.xpose.msra.mxu0 0
        %1589 = vmatprep.subr.bf16.mxu0 0
        %1590 = vmatpush1.bf16.xpose.msra.mxu0 0
        %1591 = vmatprep.subr.bf16.mxu0 0
        %1592 = vmatpush1.bf16.xpose.msra.mxu0 0
        %1593 = vmatprep.subr.bf16.mxu0 0
        %1594 = vmatpush1.bf16.xpose.msra.mxu0 0
        %1595 = vmatprep.subr.bf16.mxu0 0
        %1596 = vmatpush1.bf16.xpose.msra.mxu0 0
        %1597 = vmatprep.subr.bf16.mxu0 0
        %1598 = vmatpush1.bf16.xpose.msra.mxu0 0
        %1599 = vmatprep.subr.bf16.mxu0 0
        %1600 = vmatpush1.bf16.xpose.msra.mxu0 0
        %1601 = vmatprep.subr.bf16.mxu0 0
        %1602 = vmatpush1.bf16.xpose.msra.mxu0 0
        %1603 = vmatprep.subr.bf16.mxu0 0
        %1604 = vmatpush1.bf16.xpose.msra.mxu0 0
        %1605 = vmatprep.subr.bf16.mxu0 0
        %1606 = vmatpush1.bf16.xpose.msra.mxu0 0
        %1607 = vmatprep.subr.bf16.mxu0 0
        %1608 = vmatpush1.bf16.xpose.msra.mxu0 0
        %1609 = vmatprep.subr.bf16.mxu0 0
        %1610 = vmatpush1.bf16.xpose.msra.mxu0 0
        %1611 = vmatprep.mubr.bf16.mxu0 0
        %1612 = vmatmul.mubr.bf16.gmra.mrb[0].mxu0 %v1565
        %v1613 = vpop.f32.mrb[0].mxu0
        %v1614 = vadd.f32 0.0, %v1613
        %v1615 = vpop.f32.mrb[0].mxu0
        %v1616 = vpop.f32.mrb[0].mxu0
        %v1617 = vadd.f32 0.0, %v1616
        %v1618 = vpop.f32.mrb[0].mxu0
        %1619 = vmatprep.mubr.bf16.mxu0 0
        %1620 = vmatmul.mubr.bf16.gmra.mrb[0].mxu0 %v1568
        %v1621 = vpop.f32.mrb[0].mxu0
        %v1622 = vadd.f32 0.0, %v1621
        %v1623 = vpop.f32.mrb[0].mxu0
        %v1624 = vpop.f32.mrb[0].mxu0
        %v1625 = vadd.f32 0.0, %v1624
        %v1626 = vpop.f32.mrb[0].mxu0
        %1627 = vmatprep.mubr.bf16.mxu0 0
        %1628 = vmatmul.mubr.bf16.gmra.mrb[0].mxu0 %v1571
        %v1629 = vpop.f32.mrb[0].mxu0
        %v1630 = vadd.f32 0.0, %v1629
        %v1631 = vpop.f32.mrb[0].mxu0
        %v1632 = vpop.f32.mrb[0].mxu0
        %v1633 = vadd.f32 0.0, %v1632
        %v1634 = vpop.f32.mrb[0].mxu0
        %1635 = vmatprep.mubr.bf16.mxu0 0
        %1636 = vmatmul.mubr.bf16.gmra.mrb[0].mxu0 %v1574
        %v1637 = vpop.f32.mrb[0].mxu0
        %v1638 = vadd.f32 0.0, %v1637
        %v1639 = vpop.f32.mrb[0].mxu0
        %v1640 = vpop.f32.mrb[0].mxu0
        %v1641 = vadd.f32 0.0, %v1640
        %v1642 = vpop.f32.mrb[0].mxu0
        %1643 = vdwg.mxu0
        %1652 = vrot.lane.b32.xlu0 %v1084, 8
        %v1653 = vpop.permute.xlu0 %1652
        %1654 = vrot.lane.b32.xlu0 %v1087, 8
        %v1655 = vpop.permute.xlu0 %1654
        %1656 = vrot.lane.b32.xlu0 %v1092, 8
        %v1657 = vpop.permute.xlu0 %1656
        %1658 = vrot.lane.b32.xlu0 %v1095, 8
        %v1659 = vpop.permute.xlu0 %1658
        %1660 = vrot.lane.b32.xlu0 %v1100, 8
        %v1661 = vpop.permute.xlu0 %1660
        %1662 = vrot.lane.b32.xlu0 %v1103, 8
        %v1663 = vpop.permute.xlu0 %1662
        %1664 = vrot.lane.b32.xlu0 %v1108, 8
        %v1665 = vpop.permute.xlu0 %1664
        %1666 = vrot.lane.b32.xlu0 %v1111, 8
        %v1667 = vpop.permute.xlu0 %1666
        %1684 = vrot.lane.b32.xlu0 %v1349, 16
        %v1685 = vpop.permute.xlu0 %1684
        %1686 = vrot.lane.b32.xlu0 %v1352, 16
        %v1687 = vpop.permute.xlu0 %1686
        %1688 = vrot.lane.b32.xlu0 %v1357, 16
        %v1689 = vpop.permute.xlu0 %1688
        %1690 = vrot.lane.b32.xlu0 %v1360, 16
        %v1691 = vpop.permute.xlu0 %1690
        %1692 = vrot.lane.b32.xlu0 %v1365, 16
        %v1693 = vpop.permute.xlu0 %1692
        %1694 = vrot.lane.b32.xlu0 %v1368, 16
        %v1695 = vpop.permute.xlu0 %1694
        %1696 = vrot.lane.b32.xlu0 %v1373, 16
        %v1697 = vpop.permute.xlu0 %1696
        %1698 = vrot.lane.b32.xlu0 %v1376, 16
        %v1699 = vpop.permute.xlu0 %1698
        %1716 = vrot.lane.b32.xlu0 %v1614, 24
        %v1717 = vpop.permute.xlu0 %1716
        %1718 = vrot.lane.b32.xlu0 %v1617, 24
        %v1719 = vpop.permute.xlu0 %1718
        %1720 = vrot.lane.b32.xlu0 %v1622, 24
        %v1721 = vpop.permute.xlu0 %1720
        %1722 = vrot.lane.b32.xlu0 %v1625, 24
        %v1723 = vpop.permute.xlu0 %1722
        %1724 = vrot.lane.b32.xlu0 %v1630, 24
        %v1725 = vpop.permute.xlu0 %1724
        %1726 = vrot.lane.b32.xlu0 %v1633, 24
        %v1727 = vpop.permute.xlu0 %1726
        %1728 = vrot.lane.b32.xlu0 %v1638, 24
        %v1729 = vpop.permute.xlu0 %1728
        %1730 = vrot.lane.b32.xlu0 %v1641, 24
        %v1731 = vpop.permute.xlu0 %1730
        %v1740 = vsel %vm590, %v815, %v1653
        %v1741 = vsel %vm590, %v818, %v1655
        %v1742 = vsel %vm590, %v823, %v1657
        %v1743 = vsel %vm590, %v826, %v1659
        %v1744 = vsel %vm590, %v831, %v1661
        %v1745 = vsel %vm590, %v834, %v1663
        %v1746 = vsel %vm590, %v839, %v1665
        %v1747 = vsel %vm590, %v842, %v1667
        %v1748 = vsel %vm672, %v1740, %v1685
        %v1749 = vsel %vm672, %v1741, %v1687
        %v1750 = vsel %vm672, %v1742, %v1689
        %v1751 = vsel %vm672, %v1743, %v1691
        %v1752 = vsel %vm672, %v1744, %v1693
        %v1753 = vsel %vm672, %v1745, %v1695
        %v1754 = vsel %vm672, %v1746, %v1697
        %v1755 = vsel %vm672, %v1747, %v1699
        %vm1756 = vcmask 195584
        %v1757 = vsel %vm1756, %v1748, %v1717
        %v1758 = vsel %vm1756, %v1749, %v1719
        %v1759 = vsel %vm1756, %v1750, %v1721
        %v1760 = vsel %vm1756, %v1751, %v1723
        %v1761 = vsel %vm1756, %v1752, %v1725
        %v1762 = vsel %vm1756, %v1753, %v1727
        %v1763 = vsel %vm1756, %v1754, %v1729
        %v1764 = vsel %vm1756, %v1755, %v1731
        %1765 = vst.msk [vmem:[%s211] sm:$0xff] %vm265, %v1757
        %1766 = vst.msk [vmem:[%s211 + $0x8] sm:$0xff] %vm265, %v1758
        %1767 = vst.msk [vmem:[%s211 + $0x10] sm:$0xff] %vm265, %v1759
        %1768 = vst.msk [vmem:[%s211 + $0x18] sm:$0xff] %vm265, %v1760
        %1769 = vst.msk [vmem:[%s211 + $0x20] sm:$0xff] %vm265, %v1761
        %1770 = vst.msk [vmem:[%s211 + $0x28] sm:$0xff] %vm265, %v1762
        %1771 = vst.msk [vmem:[%s211 + $0x30] sm:$0xff] %vm265, %v1763
        %1772 = vst.msk [vmem:[%s211 + $0x38] sm:$0xff] %vm265, %v1764
        %p1773 = scmp.lt.s32.totalorder %s16, 1
        %s1774 = scalar_select %p1773, %s16, 1
        %s1775 = smul.addr %s1774, 8
        %s1776 = smul.addr %s1775, 8
        %s1777 = scalar_lea.vmem %s4, %s1776
        // Predicated region
        $region41: #{tpu_custom_call.1} parent=35 // pred_check
          %p1778 = pneg %p123
        $region42: #{tpu_custom_call.1} parent=35 // pred_check_branch
          %1780 = sbr.rel (%p1778) target = $region44
        $region43: #{tpu_custom_call.1} parent=35 // pred_region
          _
        $region44: #{tpu_custom_call.1} parent=35 // pred_fallthru
          _
      $region36: #{tpu_custom_call.1} parent=5 // pred_fallthru
        _
      %p1781 = scmp.le.s32.totalorder 2, %s11
      // Predicated region
      $region45: #{tpu_custom_call.1} parent=5 // pred_check
        %p1782 = pneg %p1781
      $region46: #{tpu_custom_call.1} parent=5 // pred_check_branch
        %1784 = sbr.rel (%p1782) target = $region48
      $region47: #{tpu_custom_call.1} parent=5 // pred_region
        %s1785 = ssub.s32 %s11, 2
        // Predicated region
        $region49: #{tpu_custom_call.1} parent=47 // pred_check
          %p1786 = pneg %p129
        $region50: #{tpu_custom_call.1} parent=47 // pred_check_branch
          %1788 = sbr.rel (%p1786) target = $region52
        $region51: #{tpu_custom_call.1} parent=47 // pred_region
          %p1789 = scmp.lt.s32.totalorder %s17, 1
          %s1790 = scalar_select %p1789, %s17, 1
          %s1791 = smul.addr %s1790, 8
          %s1792 = smul.addr %s1791, 8
          %s1793 = scalar_lea.vmem %s4, %s1792
        $region52: #{tpu_custom_call.1} parent=47 // pred_fallthru
          _
      $region48: #{tpu_custom_call.1} parent=5 // pred_fallthru
        _
    $region6: #{tpu_custom_call.1} parent=1 // loop_footer
      %s15 = sadd.s32 1, %s11
    $region7: #{tpu_custom_call.1} parent=1 // loop_footer_branch
      %10 = sbr.rel target = $region3
    $region8: #{tpu_custom_call.1} parent=1 // loop_exit
      _
    %1794 = vsyncpa [#allocation3], 1
    %s1795 = scalar_lea.sflag [#allocation3], 1
    %1796 = vsyncpa %s1795, 1

</llo_original>
